<compile_context>
chip_gen: v5e
topology: v5e:2x2
jax: 0.10.0
libtpu: 0.0.40
codegen_flags: <defaults>
</compile_context>

<pallas_src>
import functools

import jax
import jax.numpy as jnp
from jax.experimental import pallas as pl
from jax.experimental.pallas import tpu as pltpu


def _round_up(x, m):
    return ((x + m - 1) // m) * m


def _char_rnn_kernel(n_layers, b_pad, h_pad,
                     ids_ref,                      # SMEM (T*Bp,) int32   (scalar prefetch)
                     emb_ref,                      # VMEM (V, 1, Hp)      weight dtype
                     h0_ref,                       # VMEM (L, Bp, Hp)     f32
                     wih_ref, whh_ref,             # VMEM (L, Hp, 3Hp)    weight dtype
                     brz_ref,                      # VMEM (L, 1, 2Hp)     f32  (b_ih+b_hh for r,z)
                     bin_ref, bhn_ref,             # VMEM (L, 1, Hp)      f32  (n-gate biases)
                     wdec_ref,                     # VMEM (Hp, Op)        weight dtype
                     bdec_ref,                     # VMEM (1, Op)         f32
                     out_ref,                      # VMEM (1, Bp, Op)     f32  (per-step block)
                     hout_ref,                     # VMEM (L, Bp, Hp)     f32  (written once)
                     h_scr,                        # scratch (L, Bp, Hp)  f32  (carried hidden)
                     x_scr):                       # scratch (Bp, Hp)     f32  (layer input)
    Hp = h_pad
    t = pl.program_id(0)
    n_t = pl.num_programs(0)
    w_dtype = wih_ref.dtype

    # Initialize the carried hidden state from the h0 input on the first step only.
    @pl.when(t == 0)
    def _init():
        h_scr[...] = h0_ref[...]

    # Fused embedding gather: one VMEM row pick per batch element, id read from SMEM.
    base = t * b_pad
    for b in range(b_pad):                          # tiny static batch, fully unrolled
        tok = ids_ref[base + b]
        x_scr[pl.ds(b, 1), :] = emb_ref[tok].astype(jnp.float32)     # (1, Hp)

    x = x_scr[...]                                                   # (Bp, Hp) f32
    for l in range(n_layers):                                        # tiny static layer count
        h = h_scr[l]                                                 # (Bp, Hp) f32
        gi = jnp.dot(x.astype(w_dtype), wih_ref[l],
                     preferred_element_type=jnp.float32)             # (Bp, 3Hp) f32
        gh = jnp.dot(h.astype(w_dtype), whh_ref[l],
                     preferred_element_type=jnp.float32)             # (Bp, 3Hp) f32
        # Gate blocks are each Hp (=128k) lanes wide -> lane-aligned, free slices.
        rz = jax.nn.sigmoid(gi[:, :2 * Hp] + gh[:, :2 * Hp] + brz_ref[l])
        r = rz[:, :Hp]
        z = rz[:, Hp:]
        n = jnp.tanh(gi[:, 2 * Hp:] + bin_ref[l] + r * (gh[:, 2 * Hp:] + bhn_ref[l]))
        h_new = (1.0 - z) * n + z * h
        h_scr[l] = h_new
        x = h_new                                                    # feed next layer

    # Lane-dense logits block for this time step.
    out_ref[0] = (jnp.dot(x.astype(w_dtype), wdec_ref[...],
                          preferred_element_type=jnp.float32) + bdec_ref[...])

    # Write the final hidden state to HBM only once.
    @pl.when(t == n_t - 1)
    def _final():
        hout_ref[...] = h_scr[...]


def prepare_params(params, weight_dtype=jnp.bfloat16):
    """Transpose torch-layout weights to x@W layout, pad every gate block / dim to
    (8,128) vreg tiles, pre-sum the r/z biases, and cast matmul weights to
    `weight_dtype` (biases stay f32)."""
    emb = params["embedding"]                    # (V, H)
    V, H = emb.shape
    O = params["decoder_w"].shape[0]
    L = len(params["gru"])
    Hp = _round_up(H, 128)
    Op = _round_up(O, 128)

    def pad_gate_w(w):                           # torch (3H, H) -> (Hp, 3Hp), gates [r|z|n]
        wt = w.T                                 # (H, 3H)
        blocks = []
        for g in range(3):
            blk = wt[:, g * H:(g + 1) * H]       # (H, H)
            blocks.append(jnp.pad(blk, ((0, Hp - H), (0, Hp - H))))
        return jnp.concatenate(blocks, axis=1)   # (Hp, 3Hp)

    def pad_vec(v):                              # (H,) -> (Hp,)
        return jnp.pad(v, (0, Hp - H))

    wih = jnp.stack([pad_gate_w(l["weight_ih"]) for l in params["gru"]]).astype(weight_dtype)
    whh = jnp.stack([pad_gate_w(l["weight_hh"]) for l in params["gru"]]).astype(weight_dtype)

    brz_l, bin_l, bhn_l = [], [], []
    for l in params["gru"]:
        bi, bh = l["bias_ih"], l["bias_hh"]
        brz_l.append(jnp.concatenate([pad_vec(bi[0:H] + bh[0:H]),
                                      pad_vec(bi[H:2 * H] + bh[H:2 * H])])[None, :])
        bin_l.append(pad_vec(bi[2 * H:3 * H])[None, :])
        bhn_l.append(pad_vec(bh[2 * H:3 * H])[None, :])
    brz = jnp.stack(brz_l).astype(jnp.float32)   # (L, 1, 2Hp)
    b_in = jnp.stack(bin_l).astype(jnp.float32)  # (L, 1, Hp)
    b_hn = jnp.stack(bhn_l).astype(jnp.float32)  # (L, 1, Hp)

    emb_p = jnp.pad(emb, ((0, 0), (0, Hp - H))).astype(weight_dtype).reshape(V, 1, Hp)
    wdec = jnp.pad(params["decoder_w"].T, ((0, Hp - H), (0, Op - O))).astype(weight_dtype)
    bdec = jnp.pad(params["decoder_b"], (0, Op - O)).astype(jnp.float32)[None, :]

    return {
        "embedding": emb_p, "wih": wih, "whh": whh,
        "brz": brz, "bin": b_in, "bhn": b_hn,
        "wdec": wdec, "bdec": bdec,
        "n_layers": L, "hidden_size": H, "output_size": O, "vocab": V,
        "h_pad": Hp, "o_pad": Op, "weight_dtype": weight_dtype,
    }


def char_rnn_forward_seq(ids_seq, hidden, prepared):
    """Run T GRU steps (the autoregressive recurrence) inside one pallas_call.

    ids_seq : (T, B) int32 token indices
    hidden  : (L, B, H) float32 initial hidden state
    returns : (logits (T, B, O), new_hidden (L, B, H))
    """
    p = prepared
    L, H, O, V = p["n_layers"], p["hidden_size"], p["output_size"], p["vocab"]
    Hp, Op = p["h_pad"], p["o_pad"]
    T, B = ids_seq.shape
    Bp = max(8, _round_up(B, 8))

    # Pad ids / hidden once in the wrapper (pad lanes are exact zeros -> math unchanged).
    ids_p = jnp.zeros((T, Bp), jnp.int32).at[:, :B].set(ids_seq.astype(jnp.int32))
    ids_flat = ids_p.reshape(T * Bp)
    h0_p = jnp.zeros((L, Bp, Hp), jnp.float32).at[:, :B, :H].set(hidden.astype(jnp.float32))

    kernel = functools.partial(_char_rnn_kernel, L, Bp, Hp)

    grid_spec = pltpu.PrefetchScalarGridSpec(
        num_scalar_prefetch=1,                    # token ids -> SMEM
        grid=(T,),
        in_specs=[
            pl.BlockSpec((V, 1, Hp), lambda t, ids: (0, 0, 0)),        # embedding table
            pl.BlockSpec((L, Bp, Hp), lambda t, ids: (0, 0, 0)),       # h0
            pl.BlockSpec((L, Hp, 3 * Hp), lambda t, ids: (0, 0, 0)),   # W_ih (resident)
            pl.BlockSpec((L, Hp, 3 * Hp), lambda t, ids: (0, 0, 0)),   # W_hh (resident)
            pl.BlockSpec((L, 1, 2 * Hp), lambda t, ids: (0, 0, 0)),    # b_rz = b_ih+b_hh (r,z)
            pl.BlockSpec((L, 1, Hp), lambda t, ids: (0, 0, 0)),        # b_in
            pl.BlockSpec((L, 1, Hp), lambda t, ids: (0, 0, 0)),        # b_hn
            pl.BlockSpec((Hp, Op), lambda t, ids: (0, 0)),             # W_dec
            pl.BlockSpec((1, Op), lambda t, ids: (0, 0)),              # b_dec
        ],
        out_specs=(
            pl.BlockSpec((1, Bp, Op), lambda t, ids: (t, 0, 0)),       # per-step logits slab
            pl.BlockSpec((L, Bp, Hp), lambda t, ids: (0, 0, 0)),       # final hidden (1 writeback)
        ),
        scratch_shapes=[
            pltpu.VMEM((L, Bp, Hp), jnp.float32),   # carried hidden state
            pltpu.VMEM((Bp, Hp), jnp.float32),      # gathered embedding / layer input
        ],
    )

    logits_p, hout_p = pl.pallas_call(
        kernel,
        out_shape=(
            jax.ShapeDtypeStruct((T, Bp, Op), jnp.float32),
            jax.ShapeDtypeStruct((L, Bp, Hp), jnp.float32),
        ),
        grid_spec=grid_spec,
        compiler_params=pltpu.CompilerParams(
            dimension_semantics=("arbitrary",)),    # time recurrence is sequential
    )(ids_flat, p["embedding"], h0_p, p["wih"], p["whh"], p["brz"], p["bin"], p["bhn"],
      p["wdec"], p["bdec"])

    return logits_p[:, :B, :O], hout_p[:, :B, :H]


def char_rnn_forward(input_ids, hidden, prepared):
    """Mirrors CharRNN.forward(input, hidden) for model='gru' (one time step)."""
    logits_seq, h_new = char_rnn_forward_seq(input_ids[None, :], hidden, prepared)
    return logits_seq[0], h_new


def _reference_forward_seq(ids_seq, hidden, params, weight_dtype=jnp.float32):
    """Pure-JAX reference replicating torch.nn.GRU gate math step by step,
    with the same mixed precision as the kernel (weight_dtype matmuls, f32 gates)."""
    H = hidden.shape[-1]
    L = hidden.shape[0]
    emb = params["embedding"].astype(weight_dtype)
    h = [hidden[l].astype(jnp.float32) for l in range(L)]
    logits = []
    for t in range(ids_seq.shape[0]):
        x = emb[ids_seq[t]].astype(jnp.float32)                      # (B, H)
        for l in range(L):
            wih = params["gru"][l]["weight_ih"].astype(weight_dtype)
            whh = params["gru"][l]["weight_hh"].astype(weight_dtype)
            bih = params["gru"][l]["bias_ih"].astype(jnp.float32)
            bhh = params["gru"][l]["bias_hh"].astype(jnp.float32)
            gi = jnp.dot(x.astype(weight_dtype), wih.T,
                         preferred_element_type=jnp.float32) + bih
            gh = jnp.dot(h[l].astype(weight_dtype), whh.T,
                         preferred_element_type=jnp.float32) + bhh
            r = jax.nn.sigmoid(gi[:, 0:H] + gh[:, 0:H])
            z = jax.nn.sigmoid(gi[:, H:2 * H] + gh[:, H:2 * H])
            n = jnp.tanh(gi[:, 2 * H:] + r * gh[:, 2 * H:])
            h[l] = (1.0 - z) * n + z * h[l]
            x = h[l]
        wd = params["decoder_w"].astype(weight_dtype)
        bd = params["decoder_b"].astype(jnp.float32)
        logits.append(jnp.dot(x.astype(weight_dtype), wd.T,
                              preferred_element_type=jnp.float32) + bd)
    return jnp.stack(logits, axis=0), jnp.stack(h, axis=0)


def init_params(key, vocab_size, hidden_size, output_size, n_layers):
    """Deterministic synthetic parameters in PyTorch layout:
    weight_ih/weight_hh: (3H, H) with gates stacked [r; z; n], decoder: (O, H)."""
    H, O, V, L = hidden_size, output_size, vocab_size, n_layers
    keys = jax.random.split(key, 2 + 4 * L)
    bound = 1.0 / jnp.sqrt(jnp.float32(H))
    u = lambda kk, shape: jax.random.uniform(kk, shape, jnp.float32, -bound, bound)
    gru = []
    idx = 2
    for _ in range(L):
        gru.append({
            "weight_ih": u(keys[idx + 0], (3 * H, H)),
            "weight_hh": u(keys[idx + 1], (3 * H, H)),
            "bias_ih": u(keys[idx + 2], (3 * H,)),
            "bias_hh": u(keys[idx + 3], (3 * H,)),
        })
        idx += 4
    return {
        "embedding": jax.random.normal(keys[0], (V, H), jnp.float32),
        "gru": gru,
        "decoder_w": u(keys[1], (O, H)),
        "decoder_b": u(jax.random.fold_in(keys[1], 1), (O,)),
    }


if __name__ == "__main__":
    # Small, module-consistent shapes: vocab=16, hidden=32, output=16, 2 GRU layers,
    # batch=2, sequence of 8 characters.
    VOCAB, HIDDEN, OUTPUT, N_LAYERS, BATCH, SEQ = 16, 32, 16, 2, 2, 8

    key = jax.random.PRNGKey(0)
    k_param, k_in = jax.random.split(key)
    params = init_params(k_param, VOCAB, HIDDEN, OUTPUT, N_LAYERS)
    prepared = prepare_params(params, weight_dtype=jnp.bfloat16)

    ids_seq = jax.random.randint(k_in, (SEQ, BATCH), 0, VOCAB, dtype=jnp.int32)
    hidden0 = jnp.zeros((N_LAYERS, BATCH, HIDDEN), jnp.float32)   # init_hidden()

    # Full-sequence fused kernel (one pallas_call for all SEQ steps).
    fwd_seq = jax.jit(lambda ids, h: char_rnn_forward_seq(ids, h, prepared))
    logits_seq, hidden_T = fwd_seq(ids_seq, hidden0)
    jax.block_until_ready((logits_seq, hidden_T))

    ref_logits, ref_hidden = _reference_forward_seq(ids_seq, hidden0, params, jnp.bfloat16)
    assert logits_seq.shape == (SEQ, BATCH, OUTPUT)
    assert hidden_T.shape == (N_LAYERS, BATCH, HIDDEN)
    assert jnp.allclose(logits_seq, ref_logits, atol=5e-3, rtol=5e-3)
    assert jnp.allclose(hidden_T, ref_hidden, atol=5e-3, rtol=5e-3)

    # Single-step path == CharRNN.forward(input, hidden) exactly (T=1).
    logits1, hidden1 = char_rnn_forward(ids_seq[0], hidden0, prepared)
    jax.block_until_ready((logits1, hidden1))
    ref1_logits, ref1_hidden = _reference_forward_seq(ids_seq[:1], hidden0, params, jnp.bfloat16)
    assert logits1.shape == (BATCH, OUTPUT)
    assert hidden1.shape == (N_LAYERS, BATCH, HIDDEN)
    assert jnp.allclose(logits1, ref1_logits[0], atol=5e-3, rtol=5e-3)
    assert jnp.allclose(hidden1, ref1_hidden, atol=5e-3, rtol=5e-3)

    print("KERNEL_OK")
</pallas_src>

<mosaic_0001>
module attributes {stable_mosaic.version = 11 : i64} {
  func.func @_char_rnn_kernel(%arg0: i32, %arg1: memref<64xi32, #tpu.memory_space<smem>>, %arg2: memref<16x1x128xbf16, #tpu.memory_space<vmem>>, %arg3: memref<2x8x128xf32, #tpu.memory_space<vmem>>, %arg4: memref<2x128x384xbf16, #tpu.memory_space<vmem>>, %arg5: memref<2x128x384xbf16, #tpu.memory_space<vmem>>, %arg6: memref<2x1x256xf32, #tpu.memory_space<vmem>>, %arg7: memref<2x1x128xf32, #tpu.memory_space<vmem>>, %arg8: memref<2x1x128xf32, #tpu.memory_space<vmem>>, %arg9: memref<128x128xbf16, #tpu.memory_space<vmem>>, %arg10: memref<1x128xf32, #tpu.memory_space<vmem>>, %arg11: memref<1x8x128xf32, #tpu.memory_space<vmem>>, %arg12: memref<2x8x128xf32, #tpu.memory_space<vmem>>, %arg13: memref<2x8x128xf32, #tpu.memory_space<vmem>>, %arg14: memref<8x128xf32, #tpu.memory_space<vmem>>) attributes {dimension_semantics = [#tpu.dimension_semantics<arbitrary>], iteration_bounds = array<i64: 8>, scalar_prefetch = 1 : i64, scratch_operands = 2 : i64, tpu.core_type = #tpu.core_type<tc>, window_params = [{pipeline_mode = #tpu.pipeline_mode<synchronous>, transform_indices = @transform_0, window_bounds = array<i64: 16, 1, 128>}, {pipeline_mode = #tpu.pipeline_mode<synchronous>, transform_indices = @transform_1, window_bounds = array<i64: 2, 8, 128>}, {pipeline_mode = #tpu.pipeline_mode<synchronous>, transform_indices = @transform_2, window_bounds = array<i64: 2, 128, 384>}, {pipeline_mode = #tpu.pipeline_mode<synchronous>, transform_indices = @transform_3, window_bounds = array<i64: 2, 128, 384>}, {pipeline_mode = #tpu.pipeline_mode<synchronous>, transform_indices = @transform_4, window_bounds = array<i64: 2, 1, 256>}, {pipeline_mode = #tpu.pipeline_mode<synchronous>, transform_indices = @transform_5, window_bounds = array<i64: 2, 1, 128>}, {pipeline_mode = #tpu.pipeline_mode<synchronous>, transform_indices = @transform_6, window_bounds = array<i64: 2, 1, 128>}, {pipeline_mode = #tpu.pipeline_mode<synchronous>, transform_indices = @transform_7, window_bounds = array<i64: 128, 128>}, {pipeline_mode = #tpu.pipeline_mode<synchronous>, transform_indices = @transform_8, window_bounds = array<i64: 1, 128>}, {transform_indices = @transform_9, window_bounds = array<i64: 1, 8, 128>}, {pipeline_mode = #tpu.pipeline_mode<synchronous>, transform_indices = @transform_10, window_bounds = array<i64: 2, 8, 128>}]} {
    %c0_i32 = arith.constant 0 : i32
    %0 = arith.cmpi eq, %arg0, %c0_i32 : i32
    %1 = arith.extui %0 : i1 to i32
    %c0_i32_0 = arith.constant 0 : i32
    %2 = arith.cmpi ne, %1, %c0_i32_0 : i32
    scf.if %2 {
      %c0_87 = arith.constant 0 : index
      %c0_88 = arith.constant 0 : index
      %c0_89 = arith.constant 0 : index
      %171 = vector.load %arg3[%c0_87, %c0_88, %c0_89] : memref<2x8x128xf32, #tpu.memory_space<vmem>>, vector<2x8x128xf32>
      %c0_90 = arith.constant 0 : index
      %c0_91 = arith.constant 0 : index
      %c0_92 = arith.constant 0 : index
      %172 = vector.load %arg13[%c0_90, %c0_91, %c0_92] : memref<2x8x128xf32, #tpu.memory_space<vmem>>, vector<2x8x128xf32>
      tpu.vector_store %arg13[%c0_90, %c0_91, %c0_92], %171 {strides = array<i32>} : memref<2x8x128xf32, #tpu.memory_space<vmem>>, vector<2x8x128xf32>,
    } else {
    }
    %c8_i32 = arith.constant 8 : i32
    %3 = arith.muli %arg0, %c8_i32 : i32
    %c0_i32_1 = arith.constant 0 : i32
    %4 = arith.addi %3, %c0_i32_1 : i32
    %5 = arith.index_cast %4 : i32 to index
    %6 = memref.load %arg1[%5] : memref<64xi32, #tpu.memory_space<smem>>
    %7 = arith.index_cast %6 : i32 to index
    %c0 = arith.constant 0 : index
    %c0_2 = arith.constant 0 : index
    %8 = vector.load %arg2[%7, %c0, %c0_2] : memref<16x1x128xbf16, #tpu.memory_space<vmem>>, vector<1x1x128xbf16>
    %9 = vector.shape_cast %8 : vector<1x1x128xbf16> to vector<1x128xbf16>
    %10 = arith.extf %9 : vector<1x128xbf16> to vector<1x128xf32>
    %c0_3 = arith.constant 0 : index
    %c0_4 = arith.constant 0 : index
    %11 = vector.load %arg14[%c0_3, %c0_4] : memref<8x128xf32, #tpu.memory_space<vmem>>, vector<1x128xf32>
    tpu.vector_store %arg14[%c0_3, %c0_4], %10 {strides = array<i32>} : memref<8x128xf32, #tpu.memory_space<vmem>>, vector<1x128xf32>,
    %c1_i32 = arith.constant 1 : i32
    %12 = arith.addi %3, %c1_i32 : i32
    %13 = arith.index_cast %12 : i32 to index
    %14 = memref.load %arg1[%13] : memref<64xi32, #tpu.memory_space<smem>>
    %15 = arith.index_cast %14 : i32 to index
    %c0_5 = arith.constant 0 : index
    %c0_6 = arith.constant 0 : index
    %16 = vector.load %arg2[%15, %c0_5, %c0_6] : memref<16x1x128xbf16, #tpu.memory_space<vmem>>, vector<1x1x128xbf16>
    %17 = vector.shape_cast %16 : vector<1x1x128xbf16> to vector<1x128xbf16>
    %18 = arith.extf %17 : vector<1x128xbf16> to vector<1x128xf32>
    %c1 = arith.constant 1 : index
    %c0_7 = arith.constant 0 : index
    %19 = vector.load %arg14[%c1, %c0_7] : memref<8x128xf32, #tpu.memory_space<vmem>>, vector<1x128xf32>
    tpu.vector_store %arg14[%c1, %c0_7], %18 {strides = array<i32>} : memref<8x128xf32, #tpu.memory_space<vmem>>, vector<1x128xf32>,
    %c2_i32 = arith.constant 2 : i32
    %20 = arith.addi %3, %c2_i32 : i32
    %21 = arith.index_cast %20 : i32 to index
    %22 = memref.load %arg1[%21] : memref<64xi32, #tpu.memory_space<smem>>
    %23 = arith.index_cast %22 : i32 to index
    %c0_8 = arith.constant 0 : index
    %c0_9 = arith.constant 0 : index
    %24 = vector.load %arg2[%23, %c0_8, %c0_9] : memref<16x1x128xbf16, #tpu.memory_space<vmem>>, vector<1x1x128xbf16>
    %25 = vector.shape_cast %24 : vector<1x1x128xbf16> to vector<1x128xbf16>
    %26 = arith.extf %25 : vector<1x128xbf16> to vector<1x128xf32>
    %c2 = arith.constant 2 : index
    %c0_10 = arith.constant 0 : index
    %27 = vector.load %arg14[%c2, %c0_10] : memref<8x128xf32, #tpu.memory_space<vmem>>, vector<1x128xf32>
    tpu.vector_store %arg14[%c2, %c0_10], %26 {strides = array<i32>} : memref<8x128xf32, #tpu.memory_space<vmem>>, vector<1x128xf32>,
    %c3_i32 = arith.constant 3 : i32
    %28 = arith.addi %3, %c3_i32 : i32
    %29 = arith.index_cast %28 : i32 to index
    %30 = memref.load %arg1[%29] : memref<64xi32, #tpu.memory_space<smem>>
    %31 = arith.index_cast %30 : i32 to index
    %c0_11 = arith.constant 0 : index
    %c0_12 = arith.constant 0 : index
    %32 = vector.load %arg2[%31, %c0_11, %c0_12] : memref<16x1x128xbf16, #tpu.memory_space<vmem>>, vector<1x1x128xbf16>
    %33 = vector.shape_cast %32 : vector<1x1x128xbf16> to vector<1x128xbf16>
    %34 = arith.extf %33 : vector<1x128xbf16> to vector<1x128xf32>
    %c3 = arith.constant 3 : index
    %c0_13 = arith.constant 0 : index
    %35 = vector.load %arg14[%c3, %c0_13] : memref<8x128xf32, #tpu.memory_space<vmem>>, vector<1x128xf32>
    tpu.vector_store %arg14[%c3, %c0_13], %34 {strides = array<i32>} : memref<8x128xf32, #tpu.memory_space<vmem>>, vector<1x128xf32>,
    %c4_i32 = arith.constant 4 : i32
    %36 = arith.addi %3, %c4_i32 : i32
    %37 = arith.index_cast %36 : i32 to index
    %38 = memref.load %arg1[%37] : memref<64xi32, #tpu.memory_space<smem>>
    %39 = arith.index_cast %38 : i32 to index
    %c0_14 = arith.constant 0 : index
    %c0_15 = arith.constant 0 : index
    %40 = vector.load %arg2[%39, %c0_14, %c0_15] : memref<16x1x128xbf16, #tpu.memory_space<vmem>>, vector<1x1x128xbf16>
    %41 = vector.shape_cast %40 : vector<1x1x128xbf16> to vector<1x128xbf16>
    %42 = arith.extf %41 : vector<1x128xbf16> to vector<1x128xf32>
    %c4 = arith.constant 4 : index
    %c0_16 = arith.constant 0 : index
    %43 = vector.load %arg14[%c4, %c0_16] : memref<8x128xf32, #tpu.memory_space<vmem>>, vector<1x128xf32>
    tpu.vector_store %arg14[%c4, %c0_16], %42 {strides = array<i32>} : memref<8x128xf32, #tpu.memory_space<vmem>>, vector<1x128xf32>,
    %c5_i32 = arith.constant 5 : i32
    %44 = arith.addi %3, %c5_i32 : i32
    %45 = arith.index_cast %44 : i32 to index
    %46 = memref.load %arg1[%45] : memref<64xi32, #tpu.memory_space<smem>>
    %47 = arith.index_cast %46 : i32 to index
    %c0_17 = arith.constant 0 : index
    %c0_18 = arith.constant 0 : index
    %48 = vector.load %arg2[%47, %c0_17, %c0_18] : memref<16x1x128xbf16, #tpu.memory_space<vmem>>, vector<1x1x128xbf16>
    %49 = vector.shape_cast %48 : vector<1x1x128xbf16> to vector<1x128xbf16>
    %50 = arith.extf %49 : vector<1x128xbf16> to vector<1x128xf32>
    %c5 = arith.constant 5 : index
    %c0_19 = arith.constant 0 : index
    %51 = vector.load %arg14[%c5, %c0_19] : memref<8x128xf32, #tpu.memory_space<vmem>>, vector<1x128xf32>
    tpu.vector_store %arg14[%c5, %c0_19], %50 {strides = array<i32>} : memref<8x128xf32, #tpu.memory_space<vmem>>, vector<1x128xf32>,
    %c6_i32 = arith.constant 6 : i32
    %52 = arith.addi %3, %c6_i32 : i32
    %53 = arith.index_cast %52 : i32 to index
    %54 = memref.load %arg1[%53] : memref<64xi32, #tpu.memory_space<smem>>
    %55 = arith.index_cast %54 : i32 to index
    %c0_20 = arith.constant 0 : index
    %c0_21 = arith.constant 0 : index
    %56 = vector.load %arg2[%55, %c0_20, %c0_21] : memref<16x1x128xbf16, #tpu.memory_space<vmem>>, vector<1x1x128xbf16>
    %57 = vector.shape_cast %56 : vector<1x1x128xbf16> to vector<1x128xbf16>
    %58 = arith.extf %57 : vector<1x128xbf16> to vector<1x128xf32>
    %c6 = arith.constant 6 : index
    %c0_22 = arith.constant 0 : index
    %59 = vector.load %arg14[%c6, %c0_22] : memref<8x128xf32, #tpu.memory_space<vmem>>, vector<1x128xf32>
    tpu.vector_store %arg14[%c6, %c0_22], %58 {strides = array<i32>} : memref<8x128xf32, #tpu.memory_space<vmem>>, vector<1x128xf32>,
    %c7_i32 = arith.constant 7 : i32
    %60 = arith.addi %3, %c7_i32 : i32
    %61 = arith.index_cast %60 : i32 to index
    %62 = memref.load %arg1[%61] : memref<64xi32, #tpu.memory_space<smem>>
    %63 = arith.index_cast %62 : i32 to index
    %c0_23 = arith.constant 0 : index
    %c0_24 = arith.constant 0 : index
    %64 = vector.load %arg2[%63, %c0_23, %c0_24] : memref<16x1x128xbf16, #tpu.memory_space<vmem>>, vector<1x1x128xbf16>
    %65 = vector.shape_cast %64 : vector<1x1x128xbf16> to vector<1x128xbf16>
    %66 = arith.extf %65 : vector<1x128xbf16> to vector<1x128xf32>
    %c7 = arith.constant 7 : index
    %c0_25 = arith.constant 0 : index
    %67 = vector.load %arg14[%c7, %c0_25] : memref<8x128xf32, #tpu.memory_space<vmem>>, vector<1x128xf32>
    tpu.vector_store %arg14[%c7, %c0_25], %66 {strides = array<i32>} : memref<8x128xf32, #tpu.memory_space<vmem>>, vector<1x128xf32>,
    %c0_26 = arith.constant 0 : index
    %c0_27 = arith.constant 0 : index
    %68 = vector.load %arg14[%c0_26, %c0_27] : memref<8x128xf32, #tpu.memory_space<vmem>>, vector<8x128xf32>
    %c0_28 = arith.constant 0 : index
    %c0_29 = arith.constant 0 : index
    %c0_30 = arith.constant 0 : index
    %69 = vector.load %arg13[%c0_28, %c0_29, %c0_30] : memref<2x8x128xf32, #tpu.memory_space<vmem>>, vector<1x8x128xf32>
    %70 = vector.shape_cast %69 : vector<1x8x128xf32> to vector<8x128xf32>
    %71 = arith.truncf %68 : vector<8x128xf32> to vector<8x128xbf16>
    %c0_31 = arith.constant 0 : index
    %c0_32 = arith.constant 0 : index
    %c0_33 = arith.constant 0 : index
    %72 = vector.load %arg4[%c0_31, %c0_32, %c0_33] : memref<2x128x384xbf16, #tpu.memory_space<vmem>>, vector<1x128x384xbf16>
    %73 = vector.shape_cast %72 : vector<1x128x384xbf16> to vector<128x384xbf16>
    %cst = arith.constant dense<0.000000e+00> : vector<8x384xf32>
    %74 = tpu.matmul %71, %73, %cst {dimension_numbers = #tpu.dot_dimension_numbers<[1], [0], [0], [1], [0, 0, 1, 1], [], []>} : vector<8x128xbf16>, vector<128x384xbf16>, vector<8x384xf32> -> vector<8x384xf32>
    %75 = arith.truncf %70 : vector<8x128xf32> to vector<8x128xbf16>
    %c0_34 = arith.constant 0 : index
    %c0_35 = arith.constant 0 : index
    %c0_36 = arith.constant 0 : index
    %76 = vector.load %arg5[%c0_34, %c0_35, %c0_36] : memref<2x128x384xbf16, #tpu.memory_space<vmem>>, vector<1x128x384xbf16>
    %77 = vector.shape_cast %76 : vector<1x128x384xbf16> to vector<128x384xbf16>
    %cst_37 = arith.constant dense<0.000000e+00> : vector<8x384xf32>
    %78 = tpu.matmul %75, %77, %cst_37 {dimension_numbers = #tpu.dot_dimension_numbers<[1], [0], [0], [1], [0, 0, 1, 1], [], []>} : vector<8x128xbf16>, vector<128x384xbf16>, vector<8x384xf32> -> vector<8x384xf32>
    %79 = vector.extract_strided_slice %74 {offsets = [0, 0], sizes = [8, 256], strides = [1, 1]} : vector<8x384xf32> to vector<8x256xf32>
    %80 = vector.extract_strided_slice %78 {offsets = [0, 0], sizes = [8, 256], strides = [1, 1]} : vector<8x384xf32> to vector<8x256xf32>
    %81 = arith.addf %79, %80 : vector<8x256xf32>
    %c0_38 = arith.constant 0 : index
    %c0_39 = arith.constant 0 : index
    %c0_40 = arith.constant 0 : index
    %82 = vector.load %arg6[%c0_38, %c0_39, %c0_40] : memref<2x1x256xf32, #tpu.memory_space<vmem>>, vector<1x1x256xf32>
    %83 = vector.shape_cast %82 : vector<1x1x256xf32> to vector<1x256xf32>
    %84 = vector.broadcast %83 : vector<1x256xf32> to vector<8x256xf32>
    %85 = arith.addf %81, %84 : vector<8x256xf32>
    %86 = arith.negf %85 : vector<8x256xf32>
    %87 = math.exp %86 : vector<8x256xf32>
    %cst_41 = arith.constant 1.000000e+00 : f32
    %88 = vector.broadcast %cst_41 : f32 to vector<8x256xf32>
    %89 = arith.addf %88, %87 : vector<8x256xf32>
    %90 = arith.divf %88, %89 : vector<8x256xf32>
    %91 = vector.extract_strided_slice %90 {offsets = [0, 0], sizes = [8, 128], strides = [1, 1]} : vector<8x256xf32> to vector<8x128xf32>
    %92 = vector.extract_strided_slice %90 {offsets = [0, 128], sizes = [8, 128], strides = [1, 1]} : vector<8x256xf32> to vector<8x128xf32>
    %93 = vector.extract_strided_slice %74 {offsets = [0, 256], sizes = [8, 128], strides = [1, 1]} : vector<8x384xf32> to vector<8x128xf32>
    %c0_42 = arith.constant 0 : index
    %c0_43 = arith.constant 0 : index
    %c0_44 = arith.constant 0 : index
    %94 = vector.load %arg7[%c0_42, %c0_43, %c0_44] : memref<2x1x128xf32, #tpu.memory_space<vmem>>, vector<1x1x128xf32>
    %95 = vector.shape_cast %94 : vector<1x1x128xf32> to vector<1x128xf32>
    %96 = vector.broadcast %95 : vector<1x128xf32> to vector<8x128xf32>
    %97 = arith.addf %93, %96 : vector<8x128xf32>
    %98 = vector.extract_strided_slice %78 {offsets = [0, 256], sizes = [8, 128], strides = [1, 1]} : vector<8x384xf32> to vector<8x128xf32>
    %c0_45 = arith.constant 0 : index
    %c0_46 = arith.constant 0 : index
    %c0_47 = arith.constant 0 : index
    %99 = vector.load %arg8[%c0_45, %c0_46, %c0_47] : memref<2x1x128xf32, #tpu.memory_space<vmem>>, vector<1x1x128xf32>
    %100 = vector.shape_cast %99 : vector<1x1x128xf32> to vector<1x128xf32>
    %101 = vector.broadcast %100 : vector<1x128xf32> to vector<8x128xf32>
    %102 = arith.addf %98, %101 : vector<8x128xf32>
    %103 = arith.mulf %91, %102 : vector<8x128xf32>
    %104 = arith.addf %97, %103 : vector<8x128xf32>
    %105 = math.tanh %104 : vector<8x128xf32>
    %cst_48 = arith.constant 1.000000e+00 : f32
    %106 = vector.broadcast %cst_48 : f32 to vector<8x128xf32>
    %107 = arith.subf %106, %92 : vector<8x128xf32>
    %108 = arith.mulf %107, %105 : vector<8x128xf32>
    %109 = arith.mulf %92, %70 : vector<8x128xf32>
    %110 = arith.addf %108, %109 : vector<8x128xf32>
    %c0_49 = arith.constant 0 : index
    %c0_50 = arith.constant 0 : index
    %c0_51 = arith.constant 0 : index
    %111 = vector.load %arg13[%c0_49, %c0_50, %c0_51] : memref<2x8x128xf32, #tpu.memory_space<vmem>>, vector<1x8x128xf32>
    %112 = vector.shape_cast %111 : vector<1x8x128xf32> to vector<8x128xf32>
    %113 = vector.shape_cast %110 : vector<8x128xf32> to vector<1x8x128xf32>
    tpu.vector_store %arg13[%c0_49, %c0_50, %c0_51], %113 {strides = array<i32>} : memref<2x8x128xf32, #tpu.memory_space<vmem>>, vector<1x8x128xf32>,
    %c1_52 = arith.constant 1 : index
    %c0_53 = arith.constant 0 : index
    %c0_54 = arith.constant 0 : index
    %114 = vector.load %arg13[%c1_52, %c0_53, %c0_54] : memref<2x8x128xf32, #tpu.memory_space<vmem>>, vector<1x8x128xf32>
    %115 = vector.shape_cast %114 : vector<1x8x128xf32> to vector<8x128xf32>
    %116 = arith.truncf %110 : vector<8x128xf32> to vector<8x128xbf16>
    %c1_55 = arith.constant 1 : index
    %c0_56 = arith.constant 0 : index
    %c0_57 = arith.constant 0 : index
    %117 = vector.load %arg4[%c1_55, %c0_56, %c0_57] : memref<2x128x384xbf16, #tpu.memory_space<vmem>>, vector<1x128x384xbf16>
    %118 = vector.shape_cast %117 : vector<1x128x384xbf16> to vector<128x384xbf16>
    %cst_58 = arith.constant dense<0.000000e+00> : vector<8x384xf32>
    %119 = tpu.matmul %116, %118, %cst_58 {dimension_numbers = #tpu.dot_dimension_numbers<[1], [0], [0], [1], [0, 0, 1, 1], [], []>} : vector<8x128xbf16>, vector<128x384xbf16>, vector<8x384xf32> -> vector<8x384xf32>
    %120 = arith.truncf %115 : vector<8x128xf32> to vector<8x128xbf16>
    %c1_59 = arith.constant 1 : index
    %c0_60 = arith.constant 0 : index
    %c0_61 = arith.constant 0 : index
    %121 = vector.load %arg5[%c1_59, %c0_60, %c0_61] : memref<2x128x384xbf16, #tpu.memory_space<vmem>>, vector<1x128x384xbf16>
    %122 = vector.shape_cast %121 : vector<1x128x384xbf16> to vector<128x384xbf16>
    %cst_62 = arith.constant dense<0.000000e+00> : vector<8x384xf32>
    %123 = tpu.matmul %120, %122, %cst_62 {dimension_numbers = #tpu.dot_dimension_numbers<[1], [0], [0], [1], [0, 0, 1, 1], [], []>} : vector<8x128xbf16>, vector<128x384xbf16>, vector<8x384xf32> -> vector<8x384xf32>
    %124 = vector.extract_strided_slice %119 {offsets = [0, 0], sizes = [8, 256], strides = [1, 1]} : vector<8x384xf32> to vector<8x256xf32>
    %125 = vector.extract_strided_slice %123 {offsets = [0, 0], sizes = [8, 256], strides = [1, 1]} : vector<8x384xf32> to vector<8x256xf32>
    %126 = arith.addf %124, %125 : vector<8x256xf32>
    %c1_63 = arith.constant 1 : index
    %c0_64 = arith.constant 0 : index
    %c0_65 = arith.constant 0 : index
    %127 = vector.load %arg6[%c1_63, %c0_64, %c0_65] : memref<2x1x256xf32, #tpu.memory_space<vmem>>, vector<1x1x256xf32>
    %128 = vector.shape_cast %127 : vector<1x1x256xf32> to vector<1x256xf32>
    %129 = vector.broadcast %128 : vector<1x256xf32> to vector<8x256xf32>
    %130 = arith.addf %126, %129 : vector<8x256xf32>
    %131 = arith.negf %130 : vector<8x256xf32>
    %132 = math.exp %131 : vector<8x256xf32>
    %cst_66 = arith.constant 1.000000e+00 : f32
    %133 = vector.broadcast %cst_66 : f32 to vector<8x256xf32>
    %134 = arith.addf %133, %132 : vector<8x256xf32>
    %135 = arith.divf %133, %134 : vector<8x256xf32>
    %136 = vector.extract_strided_slice %135 {offsets = [0, 0], sizes = [8, 128], strides = [1, 1]} : vector<8x256xf32> to vector<8x128xf32>
    %137 = vector.extract_strided_slice %135 {offsets = [0, 128], sizes = [8, 128], strides = [1, 1]} : vector<8x256xf32> to vector<8x128xf32>
    %138 = vector.extract_strided_slice %119 {offsets = [0, 256], sizes = [8, 128], strides = [1, 1]} : vector<8x384xf32> to vector<8x128xf32>
    %c1_67 = arith.constant 1 : index
    %c0_68 = arith.constant 0 : index
    %c0_69 = arith.constant 0 : index
    %139 = vector.load %arg7[%c1_67, %c0_68, %c0_69] : memref<2x1x128xf32, #tpu.memory_space<vmem>>, vector<1x1x128xf32>
    %140 = vector.shape_cast %139 : vector<1x1x128xf32> to vector<1x128xf32>
    %141 = vector.broadcast %140 : vector<1x128xf32> to vector<8x128xf32>
    %142 = arith.addf %138, %141 : vector<8x128xf32>
    %143 = vector.extract_strided_slice %123 {offsets = [0, 256], sizes = [8, 128], strides = [1, 1]} : vector<8x384xf32> to vector<8x128xf32>
    %c1_70 = arith.constant 1 : index
    %c0_71 = arith.constant 0 : index
    %c0_72 = arith.constant 0 : index
    %144 = vector.load %arg8[%c1_70, %c0_71, %c0_72] : memref<2x1x128xf32, #tpu.memory_space<vmem>>, vector<1x1x128xf32>
    %145 = vector.shape_cast %144 : vector<1x1x128xf32> to vector<1x128xf32>
    %146 = vector.broadcast %145 : vector<1x128xf32> to vector<8x128xf32>
    %147 = arith.addf %143, %146 : vector<8x128xf32>
    %148 = arith.mulf %136, %147 : vector<8x128xf32>
    %149 = arith.addf %142, %148 : vector<8x128xf32>
    %150 = math.tanh %149 : vector<8x128xf32>
    %cst_73 = arith.constant 1.000000e+00 : f32
    %151 = vector.broadcast %cst_73 : f32 to vector<8x128xf32>
    %152 = arith.subf %151, %137 : vector<8x128xf32>
    %153 = arith.mulf %152, %150 : vector<8x128xf32>
    %154 = arith.mulf %137, %115 : vector<8x128xf32>
    %155 = arith.addf %153, %154 : vector<8x128xf32>
    %c1_74 = arith.constant 1 : index
    %c0_75 = arith.constant 0 : index
    %c0_76 = arith.constant 0 : index
    %156 = vector.load %arg13[%c1_74, %c0_75, %c0_76] : memref<2x8x128xf32, #tpu.memory_space<vmem>>, vector<1x8x128xf32>
    %157 = vector.shape_cast %156 : vector<1x8x128xf32> to vector<8x128xf32>
    %158 = vector.shape_cast %155 : vector<8x128xf32> to vector<1x8x128xf32>
    tpu.vector_store %arg13[%c1_74, %c0_75, %c0_76], %158 {strides = array<i32>} : memref<2x8x128xf32, #tpu.memory_space<vmem>>, vector<1x8x128xf32>,
    %159 = arith.truncf %155 : vector<8x128xf32> to vector<8x128xbf16>
    %c0_77 = arith.constant 0 : index
    %c0_78 = arith.constant 0 : index
    %160 = vector.load %arg9[%c0_77, %c0_78] : memref<128x128xbf16, #tpu.memory_space<vmem>>, vector<128x128xbf16>
    %cst_79 = arith.constant dense<0.000000e+00> : vector<8x128xf32>
    %161 = tpu.matmul %159, %160, %cst_79 {dimension_numbers = #tpu.dot_dimension_numbers<[1], [0], [0], [1], [0, 0, 1, 1], [], []>} : vector<8x128xbf16>, vector<128x128xbf16>, vector<8x128xf32> -> vector<8x128xf32>
    %c0_80 = arith.constant 0 : index
    %c0_81 = arith.constant 0 : index
    %162 = vector.load %arg10[%c0_80, %c0_81] : memref<1x128xf32, #tpu.memory_space<vmem>>, vector<1x128xf32>
    %163 = vector.broadcast %162 : vector<1x128xf32> to vector<8x128xf32>
    %164 = arith.addf %161, %163 : vector<8x128xf32>
    %c0_82 = arith.constant 0 : index
    %c0_83 = arith.constant 0 : index
    %c0_84 = arith.constant 0 : index
    %165 = vector.load %arg11[%c0_82, %c0_83, %c0_84] : memref<1x8x128xf32, #tpu.memory_space<vmem>>, vector<1x8x128xf32>
    %166 = vector.shape_cast %165 : vector<1x8x128xf32> to vector<8x128xf32>
    %167 = vector.shape_cast %164 : vector<8x128xf32> to vector<1x8x128xf32>
    tpu.vector_store %arg11[%c0_82, %c0_83, %c0_84], %167 {strides = array<i32>} : memref<1x8x128xf32, #tpu.memory_space<vmem>>, vector<1x8x128xf32>,
    %c7_i32_85 = arith.constant 7 : i32
    %168 = arith.cmpi eq, %arg0, %c7_i32_85 : i32
    %169 = arith.extui %168 : i1 to i32
    %c0_i32_86 = arith.constant 0 : i32
    %170 = arith.cmpi ne, %169, %c0_i32_86 : i32
    scf.if %170 {
      %c0_87 = arith.constant 0 : index
      %c0_88 = arith.constant 0 : index
      %c0_89 = arith.constant 0 : index
      %171 = vector.load %arg13[%c0_87, %c0_88, %c0_89] : memref<2x8x128xf32, #tpu.memory_space<vmem>>, vector<2x8x128xf32>
      %c0_90 = arith.constant 0 : index
      %c0_91 = arith.constant 0 : index
      %c0_92 = arith.constant 0 : index
      %172 = vector.load %arg12[%c0_90, %c0_91, %c0_92] : memref<2x8x128xf32, #tpu.memory_space<vmem>>, vector<2x8x128xf32>
      tpu.vector_store %arg12[%c0_90, %c0_91, %c0_92], %171 {strides = array<i32>} : memref<2x8x128xf32, #tpu.memory_space<vmem>>, vector<2x8x128xf32>,
    } else {
    }
    return
  }
  func.func @transform_0(%arg0: i32, %arg1: memref<64xi32, #tpu.memory_space<smem>>) -> (i32, i32, i32) {
    %c0_i32 = arith.constant 0 : i32
    %c0_i32_0 = arith.constant 0 : i32
    %c0_i32_1 = arith.constant 0 : i32
    %c0_i32_2 = arith.constant 0 : i32
    return %c0_i32, %c0_i32_0, %c0_i32_1 : i32, i32, i32
  }
  func.func @transform_1(%arg0: i32, %arg1: memref<64xi32, #tpu.memory_space<smem>>) -> (i32, i32, i32) {
    %c0_i32 = arith.constant 0 : i32
    %c0_i32_0 = arith.constant 0 : i32
    %c0_i32_1 = arith.constant 0 : i32
    %c0_i32_2 = arith.constant 0 : i32
    return %c0_i32, %c0_i32_0, %c0_i32_1 : i32, i32, i32
  }
  func.func @transform_2(%arg0: i32, %arg1: memref<64xi32, #tpu.memory_space<smem>>) -> (i32, i32, i32) {
    %c0_i32 = arith.constant 0 : i32
    %c0_i32_0 = arith.constant 0 : i32
    %c0_i32_1 = arith.constant 0 : i32
    %c0_i32_2 = arith.constant 0 : i32
    return %c0_i32, %c0_i32_0, %c0_i32_1 : i32, i32, i32
  }
  func.func @transform_3(%arg0: i32, %arg1: memref<64xi32, #tpu.memory_space<smem>>) -> (i32, i32, i32) {
    %c0_i32 = arith.constant 0 : i32
    %c0_i32_0 = arith.constant 0 : i32
    %c0_i32_1 = arith.constant 0 : i32
    %c0_i32_2 = arith.constant 0 : i32
    return %c0_i32, %c0_i32_0, %c0_i32_1 : i32, i32, i32
  }
  func.func @transform_4(%arg0: i32, %arg1: memref<64xi32, #tpu.memory_space<smem>>) -> (i32, i32, i32) {
    %c0_i32 = arith.constant 0 : i32
    %c0_i32_0 = arith.constant 0 : i32
    %c0_i32_1 = arith.constant 0 : i32
    %c0_i32_2 = arith.constant 0 : i32
    return %c0_i32, %c0_i32_0, %c0_i32_1 : i32, i32, i32
  }
  func.func @transform_5(%arg0: i32, %arg1: memref<64xi32, #tpu.memory_space<smem>>) -> (i32, i32, i32) {
    %c0_i32 = arith.constant 0 : i32
    %c0_i32_0 = arith.constant 0 : i32
    %c0_i32_1 = arith.constant 0 : i32
    %c0_i32_2 = arith.constant 0 : i32
    return %c0_i32, %c0_i32_0, %c0_i32_1 : i32, i32, i32
  }
  func.func @transform_6(%arg0: i32, %arg1: memref<64xi32, #tpu.memory_space<smem>>) -> (i32, i32, i32) {
    %c0_i32 = arith.constant 0 : i32
    %c0_i32_0 = arith.constant 0 : i32
    %c0_i32_1 = arith.constant 0 : i32
    %c0_i32_2 = arith.constant 0 : i32
    return %c0_i32, %c0_i32_0, %c0_i32_1 : i32, i32, i32
  }
  func.func @transform_7(%arg0: i32, %arg1: memref<64xi32, #tpu.memory_space<smem>>) -> (i32, i32) {
    %c0_i32 = arith.constant 0 : i32
    %c0_i32_0 = arith.constant 0 : i32
    %c0_i32_1 = arith.constant 0 : i32
    return %c0_i32, %c0_i32_0 : i32, i32
  }
  func.func @transform_8(%arg0: i32, %arg1: memref<64xi32, #tpu.memory_space<smem>>) -> (i32, i32) {
    %c0_i32 = arith.constant 0 : i32
    %c0_i32_0 = arith.constant 0 : i32
    %c0_i32_1 = arith.constant 0 : i32
    return %c0_i32, %c0_i32_0 : i32, i32
  }
  func.func @transform_9(%arg0: i32, %arg1: memref<64xi32, #tpu.memory_space<smem>>) -> (i32, i32, i32) {
    %c0_i32 = arith.constant 0 : i32
    %c0_i32_0 = arith.constant 0 : i32
    %c0_i32_1 = arith.constant 0 : i32
    return %arg0, %c0_i32, %c0_i32_0 : i32, i32, i32
  }
  func.func @transform_10(%arg0: i32, %arg1: memref<64xi32, #tpu.memory_space<smem>>) -> (i32, i32, i32) {
    %c0_i32 = arith.constant 0 : i32
    %c0_i32_0 = arith.constant 0 : i32
    %c0_i32_1 = arith.constant 0 : i32
    %c0_i32_2 = arith.constant 0 : i32
    return %c0_i32, %c0_i32_0, %c0_i32_1 : i32, i32, i32
  }
}

</mosaic_0001>

<llo_original>
// kernel: _lambda_.1
$region0: #{_lambda_.1}
  #allocation0 [shape = 'u32[]', space=smem, size = 0x4, offset = 0x4, fixed_abs, tag = 'smem constant byte address 0x4 - core index']
  #allocation1 [shape = 'u32[72,128]{1,0:T(1,128)}', space=vmem, size = 0x9000, scoped, tag = 'internal scratch']
  #allocation2 [shape = 'f32[2,8,128]{2,1,0:T(8,128)}', space=vmem, size = 0x2000, scoped, tag = 'scratch operand']
  #allocation3 [shape = 'f32[8,128]{1,0:T(8,128)}', space=vmem, size = 0x1000, scoped, tag = 'scratch operand']
  #allocation4 [shape = 's32[1]{0}', space=sflag, size = 0x4, scoped, tag = 'scoped memory for _lambda_.1']
  #allocation5 [shape = 'u8[512]{0}', space=smem, size = 0x200, scoped, tag = 'prefetched SMEM operand 0']
  %s0 = inlined_call_operand.vmem [shape: s32[64], index: 0, kind: input, shape index: {}]
  %s1 = inlined_call_operand.vmem [shape: bf16[16,1,128], index: 1, kind: input, shape index: {}]
  %s2 = inlined_call_operand.vmem [shape: f32[2,8,128], index: 2, kind: input, shape index: {}]
  %s3 = inlined_call_operand.hbm [shape: bf16[2,128,384], index: 3, kind: input, shape index: {}]
  %s4 = inlined_call_operand.hbm [shape: bf16[2,128,384], index: 4, kind: input, shape index: {}]
  %s5 = inlined_call_operand.vmem [shape: f32[2,1,256], index: 5, kind: input, shape index: {}]
  %s6 = inlined_call_operand.vmem [shape: f32[2,1,128], index: 6, kind: input, shape index: {}]
  %s7 = inlined_call_operand.vmem [shape: f32[2,1,128], index: 7, kind: input, shape index: {}]
  %s8 = inlined_call_operand.hbm [shape: bf16[128,128], index: 8, kind: input, shape index: {}]
  %s9 = inlined_call_operand.vmem [shape: f32[1,128], index: 9, kind: input, shape index: {}]
  %s10 = inlined_call_operand.vmem [shape: f32[8,8,128], index: 10, kind: output, shape index: {0}]
  %s11 = inlined_call_operand.vmem [shape: f32[2,8,128], index: 11, kind: output, shape index: {1}]
  %12 = xla_tuple %s10, %s11
  %s13 = sld [smem:[#allocation0]]
  $region97: #{_lambda_.1} parent=0
    _
  %s15 = ssub.s32 1, %s13
  %s16 = scalar_select 0, %s15, %s13
  %s18 = sshll.u32 %s0, 4
  %s19 = int_to_ptr.vmem [resolvable:$true] %s18
  %21 = dma.vmem_to_smem %s19, 16, [#allocation5], [#allocation4]
  %23 = dma.done [#allocation4], 16
  %24 = sfence
  $region1: #{_lambda_.1} parent=0
    #allocation6 [shape = 'u8[196608]{0}', space=vmem, size = 0x30000, scoped, tag = 'input window, operand 3, single buffered']
    #allocation7 [shape = 's32[2]{0}', space=sflag, size = 0x8, scoped, tag = 'scoped memory for _lambda_.1']
    #allocation8 [shape = 'u8[196608]{0}', space=vmem, size = 0x30000, scoped, tag = 'input window, operand 4, single buffered']
    #allocation9 [shape = 's32[1]{0}', space=sflag, size = 0x4, scoped, tag = 'scoped memory for _lambda_.1']
    #allocation10 [shape = 'u8[32768]{0}', space=vmem, size = 0x8000, scoped, tag = 'input window, operand 8, single buffered']
    %25 = vsyncpa [#allocation7], 0
    %26 = vsyncpa [#allocation9], 0
    loop: start=0, step=1, limit=10
    $region2: #{_lambda_.1} parent=1 // loop_pre_header
      _
    $region3: #{_lambda_.1} parent=1 // loop_header
      %s28 = sphi 0, %s32
      %p29 = scmp.ge.s32.totalorder %s28, 10
      %s36 = sphi 0, %s36
      %s38 = sphi 0, %s36
      %s39 = sphi 0, %s38
      %s53 = sphi 0, %s39
      %s57 = sphi 0, %s57
      %s59 = sphi 0, %s57
      %s60 = sphi 0, %s59
      %s74 = sphi 0, %s60
      %s78 = sphi 0, %s78
      %s80 = sphi 0, %s78
      %s81 = sphi 0, %s80
      %s95 = sphi 0, %s81
      %s99 = sphi 0, %s99
      %s101 = sphi 0, %s99
      %s102 = sphi 0, %s101
      %s116 = sphi 0, %s102
      %s120 = sphi 0, %s120
      %s122 = sphi 0, %s120
      %s123 = sphi 0, %s122
      %s137 = sphi 0, %s123
      %s141 = sphi 0, %s141
      %s143 = sphi 0, %s141
      %s144 = sphi 0, %s143
      %s158 = sphi 0, %s144
      %s162 = sphi 0, %s162
      %s164 = sphi 0, %s162
      %s165 = sphi 0, %s164
      %s179 = sphi 0, %s165
      %s183 = sphi 0, %s183
      %s185 = sphi 0, %s183
      %s186 = sphi 0, %s185
      %s200 = sphi 0, %s186
      %s204 = sphi 0, %s204
      %s206 = sphi 0, %s204
      %s207 = sphi 0, %s206
      %s221 = sphi 0, %s207
      %s227 = sphi 0, %s229
      %s230 = sphi 0, %s227
      %s231 = sphi 0, %s230
      %s247 = sphi 0, %s231
      %s251 = sphi 0, %s251
      %s253 = sphi 0, %s251
      %s254 = sphi 0, %s253
      %s268 = sphi 0, %s254
    $region4: #{_lambda_.1} parent=1 // loop_header_branch
      %31 = sbr.rel (%p29) target = $region8
    $region5: #{_lambda_.1} parent=1 // loop_body
      %s33 = ssub.s32 %s28, 1
      %s34 = ssub.s32 %s28, 2
      %s35 = sadd.s32 %s28, 1
      %s37 = sadd.s32 %s36, 1
      %p40 = scmp.eq.s32.totalorder %s28, 7
      %p41 = scmp.ne.s32.totalorder %s36, %s38
      %p42 = scmp.eq.s32.totalorder %s28, 0
      %p43 = por %p41, %p42
      %p44 = scmp.ne.s32.totalorder %s36, %s38
      %p45 = scmp.eq.s32.totalorder %s33, 7
      %p46 = por %p44, %p45
      %p47 = scmp.ne.s32.totalorder %s38, %s39
      %p48 = scmp.eq.s32.totalorder %s33, 0
      %p49 = por %p47, %p48
      %p50 = scmp.ne.s32.totalorder %s38, %s39
      %p51 = scmp.eq.s32.totalorder %s34, 7
      %p52 = por %p50, %p51
      %p54 = scmp.ne.s32.totalorder %s39, %s53
      %p55 = scmp.eq.s32.totalorder %s34, 0
      %p56 = por %p54, %p55
      %s58 = sadd.s32 %s57, 1
      %p61 = scmp.eq.s32.totalorder %s28, 7
      %p62 = scmp.ne.s32.totalorder %s57, %s59
      %p63 = scmp.eq.s32.totalorder %s28, 0
      %p64 = por %p62, %p63
      %p65 = scmp.ne.s32.totalorder %s57, %s59
      %p66 = scmp.eq.s32.totalorder %s33, 7
      %p67 = por %p65, %p66
      %p68 = scmp.ne.s32.totalorder %s59, %s60
      %p69 = scmp.eq.s32.totalorder %s33, 0
      %p70 = por %p68, %p69
      %p71 = scmp.ne.s32.totalorder %s59, %s60
      %p72 = scmp.eq.s32.totalorder %s34, 7
      %p73 = por %p71, %p72
      %p75 = scmp.ne.s32.totalorder %s60, %s74
      %p76 = scmp.eq.s32.totalorder %s34, 0
      %p77 = por %p75, %p76
      %s79 = sadd.s32 %s78, 1
      %p82 = scmp.eq.s32.totalorder %s28, 7
      %p83 = scmp.ne.s32.totalorder %s78, %s80
      %p84 = scmp.eq.s32.totalorder %s28, 0
      %p85 = por %p83, %p84
      %p86 = scmp.ne.s32.totalorder %s78, %s80
      %p87 = scmp.eq.s32.totalorder %s33, 7
      %p88 = por %p86, %p87
      %p89 = scmp.ne.s32.totalorder %s80, %s81
      %p90 = scmp.eq.s32.totalorder %s33, 0
      %p91 = por %p89, %p90
      %p92 = scmp.ne.s32.totalorder %s80, %s81
      %p93 = scmp.eq.s32.totalorder %s34, 7
      %p94 = por %p92, %p93
      %p96 = scmp.ne.s32.totalorder %s81, %s95
      %p97 = scmp.eq.s32.totalorder %s34, 0
      %p98 = por %p96, %p97
      %s100 = sadd.s32 %s99, 1
      %p103 = scmp.eq.s32.totalorder %s28, 7
      %p104 = scmp.ne.s32.totalorder %s99, %s101
      %p105 = scmp.eq.s32.totalorder %s28, 0
      %p106 = por %p104, %p105
      %p107 = scmp.ne.s32.totalorder %s99, %s101
      %p108 = scmp.eq.s32.totalorder %s33, 7
      %p109 = por %p107, %p108
      %p110 = scmp.ne.s32.totalorder %s101, %s102
      %p111 = scmp.eq.s32.totalorder %s33, 0
      %p112 = por %p110, %p111
      %p113 = scmp.ne.s32.totalorder %s101, %s102
      %p114 = scmp.eq.s32.totalorder %s34, 7
      %p115 = por %p113, %p114
      %p117 = scmp.ne.s32.totalorder %s102, %s116
      %p118 = scmp.eq.s32.totalorder %s34, 0
      %p119 = por %p117, %p118
      %s121 = sadd.s32 %s120, 1
      %p124 = scmp.eq.s32.totalorder %s28, 7
      %p125 = scmp.ne.s32.totalorder %s120, %s122
      %p126 = scmp.eq.s32.totalorder %s28, 0
      %p127 = por %p125, %p126
      %p128 = scmp.ne.s32.totalorder %s120, %s122
      %p129 = scmp.eq.s32.totalorder %s33, 7
      %p130 = por %p128, %p129
      %p131 = scmp.ne.s32.totalorder %s122, %s123
      %p132 = scmp.eq.s32.totalorder %s33, 0
      %p133 = por %p131, %p132
      %p134 = scmp.ne.s32.totalorder %s122, %s123
      %p135 = scmp.eq.s32.totalorder %s34, 7
      %p136 = por %p134, %p135
      %p138 = scmp.ne.s32.totalorder %s123, %s137
      %p139 = scmp.eq.s32.totalorder %s34, 0
      %p140 = por %p138, %p139
      %s142 = sadd.s32 %s141, 1
      %p145 = scmp.eq.s32.totalorder %s28, 7
      %p146 = scmp.ne.s32.totalorder %s141, %s143
      %p147 = scmp.eq.s32.totalorder %s28, 0
      %p148 = por %p146, %p147
      %p149 = scmp.ne.s32.totalorder %s141, %s143
      %p150 = scmp.eq.s32.totalorder %s33, 7
      %p151 = por %p149, %p150
      %p152 = scmp.ne.s32.totalorder %s143, %s144
      %p153 = scmp.eq.s32.totalorder %s33, 0
      %p154 = por %p152, %p153
      %p155 = scmp.ne.s32.totalorder %s143, %s144
      %p156 = scmp.eq.s32.totalorder %s34, 7
      %p157 = por %p155, %p156
      %p159 = scmp.ne.s32.totalorder %s144, %s158
      %p160 = scmp.eq.s32.totalorder %s34, 0
      %p161 = por %p159, %p160
      %s163 = sadd.s32 %s162, 1
      %p166 = scmp.eq.s32.totalorder %s28, 7
      %p167 = scmp.ne.s32.totalorder %s162, %s164
      %p168 = scmp.eq.s32.totalorder %s28, 0
      %p169 = por %p167, %p168
      %p170 = scmp.ne.s32.totalorder %s162, %s164
      %p171 = scmp.eq.s32.totalorder %s33, 7
      %p172 = por %p170, %p171
      %p173 = scmp.ne.s32.totalorder %s164, %s165
      %p174 = scmp.eq.s32.totalorder %s33, 0
      %p175 = por %p173, %p174
      %p176 = scmp.ne.s32.totalorder %s164, %s165
      %p177 = scmp.eq.s32.totalorder %s34, 7
      %p178 = por %p176, %p177
      %p180 = scmp.ne.s32.totalorder %s165, %s179
      %p181 = scmp.eq.s32.totalorder %s34, 0
      %p182 = por %p180, %p181
      %s184 = sadd.s32 %s183, 1
      %p187 = scmp.eq.s32.totalorder %s28, 7
      %p188 = scmp.ne.s32.totalorder %s183, %s185
      %p189 = scmp.eq.s32.totalorder %s28, 0
      %p190 = por %p188, %p189
      %p191 = scmp.ne.s32.totalorder %s183, %s185
      %p192 = scmp.eq.s32.totalorder %s33, 7
      %p193 = por %p191, %p192
      %p194 = scmp.ne.s32.totalorder %s185, %s186
      %p195 = scmp.eq.s32.totalorder %s33, 0
      %p196 = por %p194, %p195
      %p197 = scmp.ne.s32.totalorder %s185, %s186
      %p198 = scmp.eq.s32.totalorder %s34, 7
      %p199 = por %p197, %p198
      %p201 = scmp.ne.s32.totalorder %s186, %s200
      %p202 = scmp.eq.s32.totalorder %s34, 0
      %p203 = por %p201, %p202
      %s205 = sadd.s32 %s204, 1
      %p208 = scmp.eq.s32.totalorder %s28, 7
      %p209 = scmp.ne.s32.totalorder %s204, %s206
      %p210 = scmp.eq.s32.totalorder %s28, 0
      %p211 = por %p209, %p210
      %p212 = scmp.ne.s32.totalorder %s204, %s206
      %p213 = scmp.eq.s32.totalorder %s33, 7
      %p214 = por %p212, %p213
      %p215 = scmp.ne.s32.totalorder %s206, %s207
      %p216 = scmp.eq.s32.totalorder %s33, 0
      %p217 = por %p215, %p216
      %p218 = scmp.ne.s32.totalorder %s206, %s207
      %p219 = scmp.eq.s32.totalorder %s34, 7
      %p220 = por %p218, %p219
      %p222 = scmp.ne.s32.totalorder %s207, %s221
      %p223 = scmp.eq.s32.totalorder %s34, 0
      %p224 = por %p222, %p223
      %s225 = ssub.s32 %s28, %s35
      %p226 = scmp.eq.s32.totalorder %s225, 0
      %s228 = sadd.s32 %s227, 1
      %s229 = scalar_select %p226, %s227, %s228
      %p232 = pneg %p226
      %p233 = scmp.eq.s32.totalorder %s28, 7
      %p234 = por %p232, %p233
      %p235 = scmp.ne.s32.totalorder %s227, %s230
      %p236 = scmp.eq.s32.totalorder %s28, 0
      %p237 = por %p235, %p236
      %p238 = scmp.ne.s32.totalorder %s227, %s230
      %p239 = scmp.eq.s32.totalorder %s33, 7
      %p240 = por %p238, %p239
      %p241 = scmp.ne.s32.totalorder %s230, %s231
      %p242 = scmp.eq.s32.totalorder %s33, 0
      %p243 = por %p241, %p242
      %p244 = scmp.ne.s32.totalorder %s230, %s231
      %p245 = scmp.eq.s32.totalorder %s34, 7
      %p246 = por %p244, %p245
      %p248 = scmp.ne.s32.totalorder %s231, %s247
      %p249 = scmp.eq.s32.totalorder %s34, 0
      %p250 = por %p248, %p249
      %s252 = sadd.s32 %s251, 1
      %p255 = scmp.eq.s32.totalorder %s28, 7
      %p256 = scmp.ne.s32.totalorder %s251, %s253
      %p257 = scmp.eq.s32.totalorder %s28, 0
      %p258 = por %p256, %p257
      %p259 = scmp.ne.s32.totalorder %s251, %s253
      %p260 = scmp.eq.s32.totalorder %s33, 7
      %p261 = por %p259, %p260
      %p262 = scmp.ne.s32.totalorder %s253, %s254
      %p263 = scmp.eq.s32.totalorder %s33, 0
      %p264 = por %p262, %p263
      %p265 = scmp.ne.s32.totalorder %s253, %s254
      %p266 = scmp.eq.s32.totalorder %s34, 7
      %p267 = por %p265, %p266
      %p269 = scmp.ne.s32.totalorder %s254, %s268
      %p270 = scmp.eq.s32.totalorder %s34, 0
      %p271 = por %p269, %p270
      %p272 = scmp.le.s32.totalorder 1, %s28
      %p273 = scmp.lt.s32.totalorder %s28, 9
      %p274 = pnand %p272, %p273
      %p275 = pneg %p274
      // Predicated region
      $region9: #{_lambda_.1} parent=5 // pred_check
        _
      $region10: #{_lambda_.1} parent=5 // pred_check_branch
        %277 = sbr.rel (%p274) target = $region12
      $region11: #{_lambda_.1} parent=5 // pred_region
        %s278 = ssub.s32 %s28, 1
        // Predicated region
        $region13: #{_lambda_.1} parent=11 // pred_check
          %p279 = pneg %p49
        $region14: #{_lambda_.1} parent=11 // pred_check_branch
          %281 = sbr.rel (%p279) target = $region16
        $region15: #{_lambda_.1} parent=11 // pred_region
          _
        $region16: #{_lambda_.1} parent=11 // pred_fallthru
          _
        // Predicated region
        $region17: #{_lambda_.1} parent=11 // pred_check
          %p282 = pneg %p70
        $region18: #{_lambda_.1} parent=11 // pred_check_branch
          %284 = sbr.rel (%p282) target = $region20
        $region19: #{_lambda_.1} parent=11 // pred_region
          _
        $region20: #{_lambda_.1} parent=11 // pred_fallthru
          _
        // Predicated region
        $region21: #{_lambda_.1} parent=11 // pred_check
          %p285 = pneg %p91
        $region22: #{_lambda_.1} parent=11 // pred_check_branch
          %287 = sbr.rel (%p285) target = $region24
        $region23: #{_lambda_.1} parent=11 // pred_region
          %289 = vsyncadd [#allocation7], 0
          %s290 = sshll.u32 %s3, 4
          %s291 = int_to_ptr.hbm [resolvable:$true] %s290
          %s292 = sshll.u32 [#allocation6], 4
          %s293 = int_to_ptr.vmem [resolvable:$true] %s292
          %298 = dma.hbm_to_vmem [thread:$0]  %s291, 6144, %s293, [#allocation7], 192, 192, 12
        $region24: #{_lambda_.1} parent=11 // pred_fallthru
          _
        // Predicated region
        $region25: #{_lambda_.1} parent=11 // pred_check
          %p299 = pneg %p112
        $region26: #{_lambda_.1} parent=11 // pred_check_branch
          %301 = sbr.rel (%p299) target = $region28
        $region27: #{_lambda_.1} parent=11 // pred_region
          %303 = vsyncadd [#allocation9], 0
          %s304 = sshll.u32 %s4, 4
          %s305 = int_to_ptr.hbm [resolvable:$true] %s304
          %s306 = sshll.u32 [#allocation8], 4
          %s307 = int_to_ptr.vmem [resolvable:$true] %s306
          %312 = dma.hbm_to_vmem [thread:$0]  %s305, 6144, %s307, [#allocation9], 192, 192, 12
        $region28: #{_lambda_.1} parent=11 // pred_fallthru
          _
        // Predicated region
        $region29: #{_lambda_.1} parent=11 // pred_check
          %p313 = pneg %p133
        $region30: #{_lambda_.1} parent=11 // pred_check_branch
          %315 = sbr.rel (%p313) target = $region32
        $region31: #{_lambda_.1} parent=11 // pred_region
          _
        $region32: #{_lambda_.1} parent=11 // pred_fallthru
          _
        // Predicated region
        $region33: #{_lambda_.1} parent=11 // pred_check
          %p316 = pneg %p154
        $region34: #{_lambda_.1} parent=11 // pred_check_branch
          %318 = sbr.rel (%p316) target = $region36
        $region35: #{_lambda_.1} parent=11 // pred_region
          _
        $region36: #{_lambda_.1} parent=11 // pred_fallthru
          _
        // Predicated region
        $region37: #{_lambda_.1} parent=11 // pred_check
          %p319 = pneg %p175
        $region38: #{_lambda_.1} parent=11 // pred_check_branch
          %321 = sbr.rel (%p319) target = $region40
        $region39: #{_lambda_.1} parent=11 // pred_region
          _
        $region40: #{_lambda_.1} parent=11 // pred_fallthru
          _
        // Predicated region
        $region41: #{_lambda_.1} parent=11 // pred_check
          %p322 = pneg %p196
        $region42: #{_lambda_.1} parent=11 // pred_check_branch
          %324 = sbr.rel (%p322) target = $region44
        $region43: #{_lambda_.1} parent=11 // pred_region
          %326 = vsyncadd [#allocation9], 0
          %s327 = sshll.u32 %s8, 4
          %s328 = int_to_ptr.hbm [resolvable:$true] %s327
          %s329 = sshll.u32 [#allocation10], 4
          %s330 = int_to_ptr.vmem [resolvable:$true] %s329
          %335 = dma.hbm_to_vmem [thread:$0]  %s328, 1024, %s330, [#allocation9], 64, 64, 4
        $region44: #{_lambda_.1} parent=11 // pred_fallthru
          _
        // Predicated region
        $region45: #{_lambda_.1} parent=11 // pred_check
          %p336 = pneg %p217
        $region46: #{_lambda_.1} parent=11 // pred_check_branch
          %338 = sbr.rel (%p336) target = $region48
        $region47: #{_lambda_.1} parent=11 // pred_region
          _
        $region48: #{_lambda_.1} parent=11 // pred_fallthru
          _
      $region12: #{_lambda_.1} parent=5 // pred_fallthru
        _
      %p339 = scmp.lt.s32.totalorder %s28, 8
      // Predicated region
      $region49: #{_lambda_.1} parent=5 // pred_check
        %p340 = pneg %p339
      $region50: #{_lambda_.1} parent=5 // pred_check_branch
        %342 = sbr.rel (%p340) target = $region52
      $region51: #{_lambda_.1} parent=5 // pred_region
        _
      $region52: #{_lambda_.1} parent=5 // pred_fallthru
        _
      %p343 = scmp.le.s32.totalorder 1, %s28
      %p344 = scmp.lt.s32.totalorder %s28, 9
      %p345 = pnand %p343, %p344
      %p346 = pneg %p345
      // Predicated region
      $region53: #{_lambda_.1} parent=5 // pred_check
        _
      $region54: #{_lambda_.1} parent=5 // pred_check_branch
        %348 = sbr.rel (%p345) target = $region56
      $region55: #{_lambda_.1} parent=5 // pred_region
        %s349 = ssub.s32 %s28, 1
        // Predicated region
        $region57: #{_lambda_.1} parent=55 // pred_check
          %p350 = pneg %p91
        $region58: #{_lambda_.1} parent=55 // pred_check_branch
          %352 = sbr.rel (%p350) target = $region60
        $region59: #{_lambda_.1} parent=55 // pred_region
          %354 = dma.done [#allocation7], 6144
        $region60: #{_lambda_.1} parent=55 // pred_fallthru
          _
        // Predicated region
        $region61: #{_lambda_.1} parent=55 // pred_check
          %p355 = pneg %p112
        $region62: #{_lambda_.1} parent=55 // pred_check_branch
          %357 = sbr.rel (%p355) target = $region64
        $region63: #{_lambda_.1} parent=55 // pred_region
          %359 = dma.done [#allocation9], 6144
        $region64: #{_lambda_.1} parent=55 // pred_fallthru
          _
        // Predicated region
        $region65: #{_lambda_.1} parent=55 // pred_check
          %p360 = pneg %p196
        $region66: #{_lambda_.1} parent=55 // pred_check_branch
          %362 = sbr.rel (%p360) target = $region68
        $region67: #{_lambda_.1} parent=55 // pred_region
          %364 = dma.done [#allocation9], 1024
        $region68: #{_lambda_.1} parent=55 // pred_fallthru
          _
        %p365 = pneg %p49
        %p366 = pneg %p46
        %p367 = pneg %p70
        %p368 = pneg %p67
        %p369 = pneg %p91
        %p370 = pneg %p88
        %p371 = pneg %p112
        %p372 = pneg %p109
        %p373 = pneg %p133
        %p374 = pneg %p130
        %p375 = pneg %p154
        %p376 = pneg %p151
        %p377 = pneg %p175
        %p378 = pneg %p172
        %p379 = pneg %p196
        %p380 = pneg %p193
        %p381 = pneg %p217
        %p382 = pneg %p214
        %p383 = pneg %p243
        %p384 = pneg %p240
        %p385 = scmp.lt.s32.totalorder %s33, 7
        %s386 = scalar_select %p385, %s33, 7
        %s387 = smul.addr %s386, 8
        %s388 = scalar_lea.vmem %s10, %s387
        %p389 = pneg %p264
        %p390 = pneg %p261
        %p391 = scmp.lt.s32.totalorder %s33, 7
        %s392 = scalar_select %p391, %s33, 7
        %s393 = smul.addr %s392, 8
        %s394 = scalar_lea.vmem %s10, %s393
        %p395 = scmp.eq.s32.totalorder %s33, 0
        // Predicated region
        $region69: #{_lambda_.1} parent=55 // pred_check
          %p396 = pneg %p395
        $region70: #{_lambda_.1} parent=55 // pred_check_branch
          %398 = sbr.rel (%p396) target = $region72
        $region71: #{_lambda_.1} parent=55 // pred_region
          %v399 = vld [vmem:[%s2] sm:$0xff]
          %v400 = vld [vmem:[%s2 + $0x8] sm:$0xff]
          %401 = vst [vmem:[#allocation2] sm:$0xff] %v399
          %402 = vst [vmem:[#allocation2 + $0x8] sm:$0xff] %v400
        $region72: #{_lambda_.1} parent=55 // pred_fallthru
          _
        %s403 = smul.u32 %s33, 8
        %s404 = sld [smem:[#allocation5 + %s403]]
        %s405 = scalar_lea.vmem %s1, %s404
        %v406 = vld [vmem:[%s405] sm:$0x1]
        %v407 = vunpack.c.l.bf16 %v406
        %408 = vst [vmem:[#allocation3] sm:$0x1] %v407
        %s409 = sadd.s32 %s403, 1
        %s410 = sld [smem:[#allocation5 + %s409]]
        %s411 = scalar_lea.vmem %s1, %s410
        %v412 = vld [vmem:[%s411] sm:$0x1]
        %v413 = vunpack.c.l.bf16 %v412
        %414 = vst [vmem:[#allocation3 + $0x1] sm:$0x1] %v413
        %s415 = sadd.s32 %s403, 2
        %s416 = sld [smem:[#allocation5 + %s415]]
        %s417 = scalar_lea.vmem %s1, %s416
        %v418 = vld [vmem:[%s417] sm:$0x1]
        %v419 = vunpack.c.l.bf16 %v418
        %420 = vst [vmem:[#allocation3 + $0x2] sm:$0x1] %v419
        %s421 = sadd.s32 %s403, 3
        %s422 = sld [smem:[#allocation5 + %s421]]
        %s423 = scalar_lea.vmem %s1, %s422
        %v424 = vld [vmem:[%s423] sm:$0x1]
        %v425 = vunpack.c.l.bf16 %v424
        %426 = vst [vmem:[#allocation3 + $0x3] sm:$0x1] %v425
        %s427 = sadd.s32 %s403, 4
        %s428 = sld [smem:[#allocation5 + %s427]]
        %s429 = scalar_lea.vmem %s1, %s428
        %v430 = vld [vmem:[%s429] sm:$0x1]
        %v431 = vunpack.c.l.bf16 %v430
        %432 = vst [vmem:[#allocation3 + $0x4] sm:$0x1] %v431
        %s433 = sadd.s32 %s403, 5
        %s434 = sld [smem:[#allocation5 + %s433]]
        %s435 = scalar_lea.vmem %s1, %s434
        %v436 = vld [vmem:[%s435] sm:$0x1]
        %v437 = vunpack.c.l.bf16 %v436
        %438 = vst [vmem:[#allocation3 + $0x5] sm:$0x1] %v437
        %s439 = sadd.s32 %s403, 6
        %s440 = sld [smem:[#allocation5 + %s439]]
        %s441 = scalar_lea.vmem %s1, %s440
        %v442 = vld [vmem:[%s441] sm:$0x1]
        %v443 = vunpack.c.l.bf16 %v442
        %444 = vst [vmem:[#allocation3 + $0x6] sm:$0x1] %v443
        %s445 = sadd.s32 %s403, 7
        %s446 = sld [smem:[#allocation5 + %s445]]
        %s447 = scalar_lea.vmem %s1, %s446
        %v448 = vld [vmem:[%s447] sm:$0x1]
        %v449 = vunpack.c.l.bf16 %v448
        %450 = vst [vmem:[#allocation3 + $0x7] sm:$0x1] %v449
        %v451 = vld [vmem:[#allocation3] sm:$0xff]
        %v452 = vld [vmem:[#allocation2] sm:$0xff]
        %v453 = vpack.c.bf16 %v451, %v451
        %v454 = vld [vmem:[#allocation6] sm:$0xff]
        %v455 = vld [vmem:[#allocation6 + $0x8] sm:$0xf]
        %v456 = vld [vmem:[#allocation6 + $0xc] sm:$0xff]
        %v457 = vld [vmem:[#allocation6 + $0x14] sm:$0xf]
        %v458 = vld [vmem:[#allocation6 + $0x18] sm:$0xff]
        %v459 = vld [vmem:[#allocation6 + $0x20] sm:$0xf]
        %v460 = vld [vmem:[#allocation6 + $0x24] sm:$0xff]
        %v461 = vld [vmem:[#allocation6 + $0x2c] sm:$0xf]
        %v462 = vld [vmem:[#allocation6 + $0x30] sm:$0xff]
        %v463 = vld [vmem:[#allocation6 + $0x38] sm:$0xf]
        %v464 = vld [vmem:[#allocation6 + $0x3c] sm:$0xff]
        %v465 = vld [vmem:[#allocation6 + $0x44] sm:$0xf]
        %v466 = vld [vmem:[#allocation6 + $0x48] sm:$0xff]
        %v467 = vld [vmem:[#allocation6 + $0x50] sm:$0xf]
        %v468 = vld [vmem:[#allocation6 + $0x54] sm:$0xff]
        %v469 = vld [vmem:[#allocation6 + $0x5c] sm:$0xf]
        %v470 = vld [vmem:[#allocation6 + $0x60] sm:$0xff]
        %v471 = vld [vmem:[#allocation6 + $0x68] sm:$0xf]
        %v472 = vld [vmem:[#allocation6 + $0x6c] sm:$0xff]
        %v473 = vld [vmem:[#allocation6 + $0x74] sm:$0xf]
        %v474 = vld [vmem:[#allocation6 + $0x78] sm:$0xff]
        %v475 = vld [vmem:[#allocation6 + $0x80] sm:$0xf]
        %v476 = vld [vmem:[#allocation6 + $0x84] sm:$0xff]
        %v477 = vld [vmem:[#allocation6 + $0x8c] sm:$0xf]
        %v478 = vld [vmem:[#allocation6 + $0x90] sm:$0xff]
        %v479 = vld [vmem:[#allocation6 + $0x98] sm:$0xf]
        %v480 = vld [vmem:[#allocation6 + $0x9c] sm:$0xff]
        %v481 = vld [vmem:[#allocation6 + $0xa4] sm:$0xf]
        %v482 = vld [vmem:[#allocation6 + $0xa8] sm:$0xff]
        %v483 = vld [vmem:[#allocation6 + $0xb0] sm:$0xf]
        %v484 = vld [vmem:[#allocation6 + $0xb4] sm:$0xff]
        %v485 = vld [vmem:[#allocation6 + $0xbc] sm:$0xf]
        %v518 = vunpack.c.l.b16 %v454
        %v519 = vunpack.c.h.b16 %v454
        %v520 = vunpack.c.l.b16 %v455
        %v521 = vunpack.c.l.b16 %v456
        %v522 = vunpack.c.h.b16 %v456
        %v523 = vunpack.c.l.b16 %v457
        %v524 = vunpack.c.l.b16 %v458
        %v525 = vunpack.c.h.b16 %v458
        %v526 = vunpack.c.l.b16 %v459
        %v527 = vunpack.c.l.b16 %v460
        %v528 = vunpack.c.h.b16 %v460
        %v529 = vunpack.c.l.b16 %v461
        %v530 = vunpack.c.l.b16 %v462
        %v531 = vunpack.c.h.b16 %v462
        %v532 = vunpack.c.l.b16 %v463
        %v533 = vunpack.c.l.b16 %v464
        %v534 = vunpack.c.h.b16 %v464
        %v535 = vunpack.c.l.b16 %v465
        %v536 = vunpack.c.l.b16 %v466
        %v537 = vunpack.c.h.b16 %v466
        %v538 = vunpack.c.l.b16 %v467
        %v539 = vunpack.c.l.b16 %v468
        %v540 = vunpack.c.h.b16 %v468
        %v541 = vunpack.c.l.b16 %v469
        %v542 = vunpack.c.l.b16 %v470
        %v543 = vunpack.c.h.b16 %v470
        %v544 = vunpack.c.l.b16 %v471
        %v545 = vunpack.c.l.b16 %v472
        %v546 = vunpack.c.h.b16 %v472
        %v547 = vunpack.c.l.b16 %v473
        %v548 = vunpack.c.l.b16 %v474
        %v549 = vunpack.c.h.b16 %v474
        %v550 = vunpack.c.l.b16 %v475
        %v551 = vunpack.c.l.b16 %v476
        %v552 = vunpack.c.h.b16 %v476
        %v553 = vunpack.c.l.b16 %v477
        %v554 = vunpack.c.l.b16 %v478
        %v555 = vunpack.c.h.b16 %v478
        %v556 = vunpack.c.l.b16 %v479
        %v557 = vunpack.c.l.b16 %v480
        %v558 = vunpack.c.h.b16 %v480
        %v559 = vunpack.c.l.b16 %v481
        %v560 = vunpack.c.l.b16 %v482
        %v561 = vunpack.c.h.b16 %v482
        %v562 = vunpack.c.l.b16 %v483
        %v563 = vunpack.c.l.b16 %v484
        %v564 = vunpack.c.h.b16 %v484
        %v565 = vunpack.c.l.b16 %v485
        %v566 = vpack.c.b16 %v521, %v518
        %v567 = vpack.c.b16 %v522, %v519
        %v568 = vpack.c.b16 %v523, %v520
        %v569 = vpack.c.b16 %v527, %v524
        %v570 = vpack.c.b16 %v528, %v525
        %v571 = vpack.c.b16 %v529, %v526
        %v572 = vpack.c.b16 %v533, %v530
        %v573 = vpack.c.b16 %v534, %v531
        %v574 = vpack.c.b16 %v535, %v532
        %v575 = vpack.c.b16 %v539, %v536
        %v576 = vpack.c.b16 %v540, %v537
        %v577 = vpack.c.b16 %v541, %v538
        %v578 = vpack.c.b16 %v545, %v542
        %v579 = vpack.c.b16 %v546, %v543
        %v580 = vpack.c.b16 %v547, %v544
        %v581 = vpack.c.b16 %v551, %v548
        %v582 = vpack.c.b16 %v552, %v549
        %v583 = vpack.c.b16 %v553, %v550
        %v584 = vpack.c.b16 %v557, %v554
        %v585 = vpack.c.b16 %v558, %v555
        %v586 = vpack.c.b16 %v559, %v556
        %v587 = vpack.c.b16 %v563, %v560
        %v588 = vpack.c.b16 %v564, %v561
        %v589 = vpack.c.b16 %v565, %v562
        %614 = vmatpush.bf16.msra.mxu0 %v587
        %615 = vmatpush.bf16.msra.mxu0 %v584
        %616 = vmatpush.bf16.msra.mxu0 %v581
        %617 = vmatpush.bf16.msra.mxu0 %v578
        %618 = vmatpush.bf16.msra.mxu0 %v575
        %619 = vmatpush.bf16.msra.mxu0 %v572
        %620 = vmatpush.bf16.msra.mxu0 %v569
        %621 = vmatpush.bf16.msra.mxu0 %v566
        %622 = vmatmul.bf16.gmra.mxu0 %v453
        %v623 = vpop.f32.mrf.mxu0
        %v624 = vadd.f32 0.0, %v623
        %v625 = vpop.f32.mrf.mxu0
        %626 = vdwg.mxu0
        %627 = vmatpush.bf16.msra.mxu0 %v588
        %628 = vmatpush.bf16.msra.mxu0 %v585
        %629 = vmatpush.bf16.msra.mxu0 %v582
        %630 = vmatpush.bf16.msra.mxu0 %v579
        %631 = vmatpush.bf16.msra.mxu0 %v576
        %632 = vmatpush.bf16.msra.mxu0 %v573
        %633 = vmatpush.bf16.msra.mxu0 %v570
        %634 = vmatpush.bf16.msra.mxu0 %v567
        %635 = vmatmul.bf16.gmra.mxu0 %v453
        %v636 = vpop.f32.mrf.mxu0
        %v637 = vadd.f32 0.0, %v636
        %v638 = vpop.f32.mrf.mxu0
        %639 = vdwg.mxu0
        %640 = vmatpush.bf16.msra.mxu0 %v589
        %641 = vmatpush.bf16.msra.mxu0 %v586
        %642 = vmatpush.bf16.msra.mxu0 %v583
        %643 = vmatpush.bf16.msra.mxu0 %v580
        %644 = vmatpush.bf16.msra.mxu0 %v577
        %645 = vmatpush.bf16.msra.mxu0 %v574
        %646 = vmatpush.bf16.msra.mxu0 %v571
        %647 = vmatpush.bf16.msra.mxu0 %v568
        %648 = vmatmul.bf16.gmra.mxu0 %v453
        %v649 = vpop.f32.mrf.mxu0
        %v650 = vadd.f32 0.0, %v649
        %v651 = vpop.f32.mrf.mxu0
        %652 = vdwg.mxu0
        %v653 = vpack.c.bf16 %v452, %v452
        %v654 = vld [vmem:[#allocation8] sm:$0xff]
        %v655 = vld [vmem:[#allocation8 + $0x8] sm:$0xf]
        %v656 = vld [vmem:[#allocation8 + $0xc] sm:$0xff]
        %v657 = vld [vmem:[#allocation8 + $0x14] sm:$0xf]
        %v658 = vld [vmem:[#allocation8 + $0x18] sm:$0xff]
        %v659 = vld [vmem:[#allocation8 + $0x20] sm:$0xf]
        %v660 = vld [vmem:[#allocation8 + $0x24] sm:$0xff]
        %v661 = vld [vmem:[#allocation8 + $0x2c] sm:$0xf]
        %v662 = vld [vmem:[#allocation8 + $0x30] sm:$0xff]
        %v663 = vld [vmem:[#allocation8 + $0x38] sm:$0xf]
        %v664 = vld [vmem:[#allocation8 + $0x3c] sm:$0xff]
        %v665 = vld [vmem:[#allocation8 + $0x44] sm:$0xf]
        %v666 = vld [vmem:[#allocation8 + $0x48] sm:$0xff]
        %v667 = vld [vmem:[#allocation8 + $0x50] sm:$0xf]
        %v668 = vld [vmem:[#allocation8 + $0x54] sm:$0xff]
        %v669 = vld [vmem:[#allocation8 + $0x5c] sm:$0xf]
        %v670 = vld [vmem:[#allocation8 + $0x60] sm:$0xff]
        %v671 = vld [vmem:[#allocation8 + $0x68] sm:$0xf]
        %v672 = vld [vmem:[#allocation8 + $0x6c] sm:$0xff]
        %v673 = vld [vmem:[#allocation8 + $0x74] sm:$0xf]
        %v674 = vld [vmem:[#allocation8 + $0x78] sm:$0xff]
        %v675 = vld [vmem:[#allocation8 + $0x80] sm:$0xf]
        %v676 = vld [vmem:[#allocation8 + $0x84] sm:$0xff]
        %v677 = vld [vmem:[#allocation8 + $0x8c] sm:$0xf]
        %v678 = vld [vmem:[#allocation8 + $0x90] sm:$0xff]
        %v679 = vld [vmem:[#allocation8 + $0x98] sm:$0xf]
        %v680 = vld [vmem:[#allocation8 + $0x9c] sm:$0xff]
        %v681 = vld [vmem:[#allocation8 + $0xa4] sm:$0xf]
        %v682 = vld [vmem:[#allocation8 + $0xa8] sm:$0xff]
        %v683 = vld [vmem:[#allocation8 + $0xb0] sm:$0xf]
        %v684 = vld [vmem:[#allocation8 + $0xb4] sm:$0xff]
        %v685 = vld [vmem:[#allocation8 + $0xbc] sm:$0xf]
        %v718 = vunpack.c.l.b16 %v654
        %v719 = vunpack.c.h.b16 %v654
        %v720 = vunpack.c.l.b16 %v655
        %v721 = vunpack.c.l.b16 %v656
        %v722 = vunpack.c.h.b16 %v656
        %v723 = vunpack.c.l.b16 %v657
        %v724 = vunpack.c.l.b16 %v658
        %v725 = vunpack.c.h.b16 %v658
        %v726 = vunpack.c.l.b16 %v659
        %v727 = vunpack.c.l.b16 %v660
        %v728 = vunpack.c.h.b16 %v660
        %v729 = vunpack.c.l.b16 %v661
        %v730 = vunpack.c.l.b16 %v662
        %v731 = vunpack.c.h.b16 %v662
        %v732 = vunpack.c.l.b16 %v663
        %v733 = vunpack.c.l.b16 %v664
        %v734 = vunpack.c.h.b16 %v664
        %v735 = vunpack.c.l.b16 %v665
        %v736 = vunpack.c.l.b16 %v666
        %v737 = vunpack.c.h.b16 %v666
        %v738 = vunpack.c.l.b16 %v667
        %v739 = vunpack.c.l.b16 %v668
        %v740 = vunpack.c.h.b16 %v668
        %v741 = vunpack.c.l.b16 %v669
        %v742 = vunpack.c.l.b16 %v670
        %v743 = vunpack.c.h.b16 %v670
        %v744 = vunpack.c.l.b16 %v671
        %v745 = vunpack.c.l.b16 %v672
        %v746 = vunpack.c.h.b16 %v672
        %v747 = vunpack.c.l.b16 %v673
        %v748 = vunpack.c.l.b16 %v674
        %v749 = vunpack.c.h.b16 %v674
        %v750 = vunpack.c.l.b16 %v675
        %v751 = vunpack.c.l.b16 %v676
        %v752 = vunpack.c.h.b16 %v676
        %v753 = vunpack.c.l.b16 %v677
        %v754 = vunpack.c.l.b16 %v678
        %v755 = vunpack.c.h.b16 %v678
        %v756 = vunpack.c.l.b16 %v679
        %v757 = vunpack.c.l.b16 %v680
        %v758 = vunpack.c.h.b16 %v680
        %v759 = vunpack.c.l.b16 %v681
        %v760 = vunpack.c.l.b16 %v682
        %v761 = vunpack.c.h.b16 %v682
        %v762 = vunpack.c.l.b16 %v683
        %v763 = vunpack.c.l.b16 %v684
        %v764 = vunpack.c.h.b16 %v684
        %v765 = vunpack.c.l.b16 %v685
        %v766 = vpack.c.b16 %v721, %v718
        %v767 = vpack.c.b16 %v722, %v719
        %v768 = vpack.c.b16 %v723, %v720
        %v769 = vpack.c.b16 %v727, %v724
        %v770 = vpack.c.b16 %v728, %v725
        %v771 = vpack.c.b16 %v729, %v726
        %v772 = vpack.c.b16 %v733, %v730
        %v773 = vpack.c.b16 %v734, %v731
        %v774 = vpack.c.b16 %v735, %v732
        %v775 = vpack.c.b16 %v739, %v736
        %v776 = vpack.c.b16 %v740, %v737
        %v777 = vpack.c.b16 %v741, %v738
        %v778 = vpack.c.b16 %v745, %v742
        %v779 = vpack.c.b16 %v746, %v743
        %v780 = vpack.c.b16 %v747, %v744
        %v781 = vpack.c.b16 %v751, %v748
        %v782 = vpack.c.b16 %v752, %v749
        %v783 = vpack.c.b16 %v753, %v750
        %v784 = vpack.c.b16 %v757, %v754
        %v785 = vpack.c.b16 %v758, %v755
        %v786 = vpack.c.b16 %v759, %v756
        %v787 = vpack.c.b16 %v763, %v760
        %v788 = vpack.c.b16 %v764, %v761
        %v789 = vpack.c.b16 %v765, %v762
        %814 = vmatpush.bf16.msra.mxu0 %v787
        %815 = vmatpush.bf16.msra.mxu0 %v784
        %816 = vmatpush.bf16.msra.mxu0 %v781
        %817 = vmatpush.bf16.msra.mxu0 %v778
        %818 = vmatpush.bf16.msra.mxu0 %v775
        %819 = vmatpush.bf16.msra.mxu0 %v772
        %820 = vmatpush.bf16.msra.mxu0 %v769
        %821 = vmatpush.bf16.msra.mxu0 %v766
        %822 = vmatmul.bf16.gmra.mxu0 %v653
        %v823 = vpop.f32.mrf.mxu0
        %v824 = vadd.f32 0.0, %v823
        %v825 = vpop.f32.mrf.mxu0
        %826 = vdwg.mxu0
        %827 = vmatpush.bf16.msra.mxu0 %v788
        %828 = vmatpush.bf16.msra.mxu0 %v785
        %829 = vmatpush.bf16.msra.mxu0 %v782
        %830 = vmatpush.bf16.msra.mxu0 %v779
        %831 = vmatpush.bf16.msra.mxu0 %v776
        %832 = vmatpush.bf16.msra.mxu0 %v773
        %833 = vmatpush.bf16.msra.mxu0 %v770
        %834 = vmatpush.bf16.msra.mxu0 %v767
        %835 = vmatmul.bf16.gmra.mxu0 %v653
        %v836 = vpop.f32.mrf.mxu0
        %v837 = vadd.f32 0.0, %v836
        %v838 = vpop.f32.mrf.mxu0
        %839 = vdwg.mxu0
        %840 = vmatpush.bf16.msra.mxu0 %v789
        %841 = vmatpush.bf16.msra.mxu0 %v786
        %842 = vmatpush.bf16.msra.mxu0 %v783
        %843 = vmatpush.bf16.msra.mxu0 %v780
        %844 = vmatpush.bf16.msra.mxu0 %v777
        %845 = vmatpush.bf16.msra.mxu0 %v774
        %846 = vmatpush.bf16.msra.mxu0 %v771
        %847 = vmatpush.bf16.msra.mxu0 %v768
        %848 = vmatmul.bf16.gmra.mxu0 %v653
        %v849 = vpop.f32.mrf.mxu0
        %v850 = vadd.f32 0.0, %v849
        %v851 = vpop.f32.mrf.mxu0
        %852 = vdwg.mxu0
        %v853 = vadd.f32 %v624, %v824
        %v854 = vadd.f32 %v637, %v837
        %v855 = vld [vmem:[%s5] sm:$0x3]
        %v857 = vperm.slane %v855, 0
        %v858 = vperm.slane %v855, 1
        %v861 = vadd.f32 %v853, %v857
        %v862 = vadd.f32 %v854, %v858
        %v863 = vxor.u32 %v861, 2147483648
        %v864 = vxor.u32 %v862, 2147483648
        %v865 = vmul.f32 %v863, 1.442695
        %v866 = vpow.pop %v865
        %v867 = vmul.f32 %v864, 1.442695
        %v868 = vpow.pop %v867
        %v869 = vadd.f32 %v866, 1.0
        %v870 = vadd.f32 %v868, 1.0
        %v871 = vrcp.pop %v869
        %v872 = vmul.f32 %v869, %v871
        %v873 = vsub.f32 1.0, %v872
        %v874 = vmul.f32 %v871, %v873
        %v875 = vadd.f32 %v871, %v874
        %vm876 = vweird.f32 %v869
        %vm877 = vweird.f32 %v871
        %vm878 = vmor %vm876, %vm877
        %v879 = vsel %vm878, %v871, %v875
        %v880 = vand.u32 2147483647, %v869
        %vm881 = vcmp.eq.f32.partialorder %v880, 8.507059e+37
        %v882 = vand.u32 %v869, 2147483648
        %v883 = vor.u32 1.1754944e-38, %v882
        %v884 = vsel %vm881, %v883, %v879
        %v885 = vmul.f32 1.0, %v884
        %v886 = vrcp.pop %v870
        %v887 = vmul.f32 %v870, %v886
        %v888 = vsub.f32 1.0, %v887
        %v889 = vmul.f32 %v886, %v888
        %v890 = vadd.f32 %v886, %v889
        %vm891 = vweird.f32 %v870
        %vm892 = vweird.f32 %v886
        %vm893 = vmor %vm891, %vm892
        %v894 = vsel %vm893, %v886, %v890
        %v895 = vand.u32 2147483647, %v870
        %vm896 = vcmp.eq.f32.partialorder %v895, 8.507059e+37
        %v897 = vand.u32 %v870, 2147483648
        %v898 = vor.u32 1.1754944e-38, %v897
        %v899 = vsel %vm896, %v898, %v894
        %v900 = vmul.f32 1.0, %v899
        %v901 = vld [vmem:[%s6] sm:$0x1]
        %v903 = vperm.slane %v901, 0
        %v905 = vadd.f32 %v650, %v903
        %v906 = vld [vmem:[%s7] sm:$0x1]
        %v908 = vperm.slane %v906, 0
        %v910 = vadd.f32 %v850, %v908
        %v911 = vmul.f32 %v885, %v910
        %v912 = vadd.f32 %v905, %v911
        %v913 = vtanh.pop %v912
        %v914 = vsub.f32 1.0, %v900
        %v915 = vmul.f32 %v914, %v913
        %v916 = vmul.f32 %v900, %v452
        %v917 = vadd.f32 %v915, %v916
        %918 = vst [vmem:[#allocation2] sm:$0xff] %v917
        %s919 = scalar_lea.vmem [#allocation2], 8
        %v920 = vld [vmem:[%s919] sm:$0xff]
        %v921 = vpack.c.bf16 %v917, %v917
        %s922 = scalar_lea.vmem [#allocation6], 192
        %v923 = vld [vmem:[%s922] sm:$0xff]
        %v924 = vld [vmem:[%s922 + $0x8] sm:$0xf]
        %v925 = vld [vmem:[%s922 + $0xc] sm:$0xff]
        %v926 = vld [vmem:[%s922 + $0x14] sm:$0xf]
        %v927 = vld [vmem:[%s922 + $0x18] sm:$0xff]
        %v928 = vld [vmem:[%s922 + $0x20] sm:$0xf]
        %v929 = vld [vmem:[%s922 + $0x24] sm:$0xff]
        %v930 = vld [vmem:[%s922 + $0x2c] sm:$0xf]
        %v931 = vld [vmem:[%s922 + $0x30] sm:$0xff]
        %v932 = vld [vmem:[%s922 + $0x38] sm:$0xf]
        %v933 = vld [vmem:[%s922 + $0x3c] sm:$0xff]
        %v934 = vld [vmem:[%s922 + $0x44] sm:$0xf]
        %v935 = vld [vmem:[%s922 + $0x48] sm:$0xff]
        %v936 = vld [vmem:[%s922 + $0x50] sm:$0xf]
        %v937 = vld [vmem:[%s922 + $0x54] sm:$0xff]
        %v938 = vld [vmem:[%s922 + $0x5c] sm:$0xf]
        %v939 = vld [vmem:[%s922 + $0x60] sm:$0xff]
        %v940 = vld [vmem:[%s922 + $0x68] sm:$0xf]
        %v941 = vld [vmem:[%s922 + $0x6c] sm:$0xff]
        %v942 = vld [vmem:[%s922 + $0x74] sm:$0xf]
        %v943 = vld [vmem:[%s922 + $0x78] sm:$0xff]
        %v944 = vld [vmem:[%s922 + $0x80] sm:$0xf]
        %v945 = vld [vmem:[%s922 + $0x84] sm:$0xff]
        %v946 = vld [vmem:[%s922 + $0x8c] sm:$0xf]
        %v947 = vld [vmem:[%s922 + $0x90] sm:$0xff]
        %v948 = vld [vmem:[%s922 + $0x98] sm:$0xf]
        %v949 = vld [vmem:[%s922 + $0x9c] sm:$0xff]
        %v950 = vld [vmem:[%s922 + $0xa4] sm:$0xf]
        %v951 = vld [vmem:[%s922 + $0xa8] sm:$0xff]
        %v952 = vld [vmem:[%s922 + $0xb0] sm:$0xf]
        %v953 = vld [vmem:[%s922 + $0xb4] sm:$0xff]
        %v954 = vld [vmem:[%s922 + $0xbc] sm:$0xf]
        %v987 = vunpack.c.l.b16 %v923
        %v988 = vunpack.c.h.b16 %v923
        %v989 = vunpack.c.l.b16 %v924
        %v990 = vunpack.c.l.b16 %v925
        %v991 = vunpack.c.h.b16 %v925
        %v992 = vunpack.c.l.b16 %v926
        %v993 = vunpack.c.l.b16 %v927
        %v994 = vunpack.c.h.b16 %v927
        %v995 = vunpack.c.l.b16 %v928
        %v996 = vunpack.c.l.b16 %v929
        %v997 = vunpack.c.h.b16 %v929
        %v998 = vunpack.c.l.b16 %v930
        %v999 = vunpack.c.l.b16 %v931
        %v1000 = vunpack.c.h.b16 %v931
        %v1001 = vunpack.c.l.b16 %v932
        %v1002 = vunpack.c.l.b16 %v933
        %v1003 = vunpack.c.h.b16 %v933
        %v1004 = vunpack.c.l.b16 %v934
        %v1005 = vunpack.c.l.b16 %v935
        %v1006 = vunpack.c.h.b16 %v935
        %v1007 = vunpack.c.l.b16 %v936
        %v1008 = vunpack.c.l.b16 %v937
        %v1009 = vunpack.c.h.b16 %v937
        %v1010 = vunpack.c.l.b16 %v938
        %v1011 = vunpack.c.l.b16 %v939
        %v1012 = vunpack.c.h.b16 %v939
        %v1013 = vunpack.c.l.b16 %v940
        %v1014 = vunpack.c.l.b16 %v941
        %v1015 = vunpack.c.h.b16 %v941
        %v1016 = vunpack.c.l.b16 %v942
        %v1017 = vunpack.c.l.b16 %v943
        %v1018 = vunpack.c.h.b16 %v943
        %v1019 = vunpack.c.l.b16 %v944
        %v1020 = vunpack.c.l.b16 %v945
        %v1021 = vunpack.c.h.b16 %v945
        %v1022 = vunpack.c.l.b16 %v946
        %v1023 = vunpack.c.l.b16 %v947
        %v1024 = vunpack.c.h.b16 %v947
        %v1025 = vunpack.c.l.b16 %v948
        %v1026 = vunpack.c.l.b16 %v949
        %v1027 = vunpack.c.h.b16 %v949
        %v1028 = vunpack.c.l.b16 %v950
        %v1029 = vunpack.c.l.b16 %v951
        %v1030 = vunpack.c.h.b16 %v951
        %v1031 = vunpack.c.l.b16 %v952
        %v1032 = vunpack.c.l.b16 %v953
        %v1033 = vunpack.c.h.b16 %v953
        %v1034 = vunpack.c.l.b16 %v954
        %v1035 = vpack.c.b16 %v990, %v987
        %v1036 = vpack.c.b16 %v991, %v988
        %v1037 = vpack.c.b16 %v992, %v989
        %v1038 = vpack.c.b16 %v996, %v993
        %v1039 = vpack.c.b16 %v997, %v994
        %v1040 = vpack.c.b16 %v998, %v995
        %v1041 = vpack.c.b16 %v1002, %v999
        %v1042 = vpack.c.b16 %v1003, %v1000
        %v1043 = vpack.c.b16 %v1004, %v1001
        %v1044 = vpack.c.b16 %v1008, %v1005
        %v1045 = vpack.c.b16 %v1009, %v1006
        %v1046 = vpack.c.b16 %v1010, %v1007
        %v1047 = vpack.c.b16 %v1014, %v1011
        %v1048 = vpack.c.b16 %v1015, %v1012
        %v1049 = vpack.c.b16 %v1016, %v1013
        %v1050 = vpack.c.b16 %v1020, %v1017
        %v1051 = vpack.c.b16 %v1021, %v1018
        %v1052 = vpack.c.b16 %v1022, %v1019
        %v1053 = vpack.c.b16 %v1026, %v1023
        %v1054 = vpack.c.b16 %v1027, %v1024
        %v1055 = vpack.c.b16 %v1028, %v1025
        %v1056 = vpack.c.b16 %v1032, %v1029
        %v1057 = vpack.c.b16 %v1033, %v1030
        %v1058 = vpack.c.b16 %v1034, %v1031
        %1083 = vmatpush.bf16.msra.mxu0 %v1056
        %1084 = vmatpush.bf16.msra.mxu0 %v1053
        %1085 = vmatpush.bf16.msra.mxu0 %v1050
        %1086 = vmatpush.bf16.msra.mxu0 %v1047
        %1087 = vmatpush.bf16.msra.mxu0 %v1044
        %1088 = vmatpush.bf16.msra.mxu0 %v1041
        %1089 = vmatpush.bf16.msra.mxu0 %v1038
        %1090 = vmatpush.bf16.msra.mxu0 %v1035
        %1091 = vmatmul.bf16.gmra.mxu0 %v921
        %v1092 = vpop.f32.mrf.mxu0
        %v1093 = vadd.f32 0.0, %v1092
        %v1094 = vpop.f32.mrf.mxu0
        %1095 = vdwg.mxu0
        %1096 = vmatpush.bf16.msra.mxu0 %v1057
        %1097 = vmatpush.bf16.msra.mxu0 %v1054
        %1098 = vmatpush.bf16.msra.mxu0 %v1051
        %1099 = vmatpush.bf16.msra.mxu0 %v1048
        %1100 = vmatpush.bf16.msra.mxu0 %v1045
        %1101 = vmatpush.bf16.msra.mxu0 %v1042
        %1102 = vmatpush.bf16.msra.mxu0 %v1039
        %1103 = vmatpush.bf16.msra.mxu0 %v1036
        %1104 = vmatmul.bf16.gmra.mxu0 %v921
        %v1105 = vpop.f32.mrf.mxu0
        %v1106 = vadd.f32 0.0, %v1105
        %v1107 = vpop.f32.mrf.mxu0
        %1108 = vdwg.mxu0
        %1109 = vmatpush.bf16.msra.mxu0 %v1058
        %1110 = vmatpush.bf16.msra.mxu0 %v1055
        %1111 = vmatpush.bf16.msra.mxu0 %v1052
        %1112 = vmatpush.bf16.msra.mxu0 %v1049
        %1113 = vmatpush.bf16.msra.mxu0 %v1046
        %1114 = vmatpush.bf16.msra.mxu0 %v1043
        %1115 = vmatpush.bf16.msra.mxu0 %v1040
        %1116 = vmatpush.bf16.msra.mxu0 %v1037
        %1117 = vmatmul.bf16.gmra.mxu0 %v921
        %v1118 = vpop.f32.mrf.mxu0
        %v1119 = vadd.f32 0.0, %v1118
        %v1120 = vpop.f32.mrf.mxu0
        %1121 = vdwg.mxu0
        %v1122 = vpack.c.bf16 %v920, %v920
        %s1123 = scalar_lea.vmem [#allocation8], 192
        %v1124 = vld [vmem:[%s1123] sm:$0xff]
        %v1125 = vld [vmem:[%s1123 + $0x8] sm:$0xf]
        %v1126 = vld [vmem:[%s1123 + $0xc] sm:$0xff]
        %v1127 = vld [vmem:[%s1123 + $0x14] sm:$0xf]
        %v1128 = vld [vmem:[%s1123 + $0x18] sm:$0xff]
        %v1129 = vld [vmem:[%s1123 + $0x20] sm:$0xf]
        %v1130 = vld [vmem:[%s1123 + $0x24] sm:$0xff]
        %v1131 = vld [vmem:[%s1123 + $0x2c] sm:$0xf]
        %v1132 = vld [vmem:[%s1123 + $0x30] sm:$0xff]
        %v1133 = vld [vmem:[%s1123 + $0x38] sm:$0xf]
        %v1134 = vld [vmem:[%s1123 + $0x3c] sm:$0xff]
        %v1135 = vld [vmem:[%s1123 + $0x44] sm:$0xf]
        %v1136 = vld [vmem:[%s1123 + $0x48] sm:$0xff]
        %v1137 = vld [vmem:[%s1123 + $0x50] sm:$0xf]
        %v1138 = vld [vmem:[%s1123 + $0x54] sm:$0xff]
        %v1139 = vld [vmem:[%s1123 + $0x5c] sm:$0xf]
        %v1140 = vld [vmem:[%s1123 + $0x60] sm:$0xff]
        %v1141 = vld [vmem:[%s1123 + $0x68] sm:$0xf]
        %v1142 = vld [vmem:[%s1123 + $0x6c] sm:$0xff]
        %v1143 = vld [vmem:[%s1123 + $0x74] sm:$0xf]
        %v1144 = vld [vmem:[%s1123 + $0x78] sm:$0xff]
        %v1145 = vld [vmem:[%s1123 + $0x80] sm:$0xf]
        %v1146 = vld [vmem:[%s1123 + $0x84] sm:$0xff]
        %v1147 = vld [vmem:[%s1123 + $0x8c] sm:$0xf]
        %v1148 = vld [vmem:[%s1123 + $0x90] sm:$0xff]
        %v1149 = vld [vmem:[%s1123 + $0x98] sm:$0xf]
        %v1150 = vld [vmem:[%s1123 + $0x9c] sm:$0xff]
        %v1151 = vld [vmem:[%s1123 + $0xa4] sm:$0xf]
        %v1152 = vld [vmem:[%s1123 + $0xa8] sm:$0xff]
        %v1153 = vld [vmem:[%s1123 + $0xb0] sm:$0xf]
        %v1154 = vld [vmem:[%s1123 + $0xb4] sm:$0xff]
        %v1155 = vld [vmem:[%s1123 + $0xbc] sm:$0xf]
        %v1188 = vunpack.c.l.b16 %v1124
        %v1189 = vunpack.c.h.b16 %v1124
        %v1190 = vunpack.c.l.b16 %v1125
        %v1191 = vunpack.c.l.b16 %v1126
        %v1192 = vunpack.c.h.b16 %v1126
        %v1193 = vunpack.c.l.b16 %v1127
        %v1194 = vunpack.c.l.b16 %v1128
        %v1195 = vunpack.c.h.b16 %v1128
        %v1196 = vunpack.c.l.b16 %v1129
        %v1197 = vunpack.c.l.b16 %v1130
        %v1198 = vunpack.c.h.b16 %v1130
        %v1199 = vunpack.c.l.b16 %v1131
        %v1200 = vunpack.c.l.b16 %v1132
        %v1201 = vunpack.c.h.b16 %v1132
        %v1202 = vunpack.c.l.b16 %v1133
        %v1203 = vunpack.c.l.b16 %v1134
        %v1204 = vunpack.c.h.b16 %v1134
        %v1205 = vunpack.c.l.b16 %v1135
        %v1206 = vunpack.c.l.b16 %v1136
        %v1207 = vunpack.c.h.b16 %v1136
        %v1208 = vunpack.c.l.b16 %v1137
        %v1209 = vunpack.c.l.b16 %v1138
        %v1210 = vunpack.c.h.b16 %v1138
        %v1211 = vunpack.c.l.b16 %v1139
        %v1212 = vunpack.c.l.b16 %v1140
        %v1213 = vunpack.c.h.b16 %v1140
        %v1214 = vunpack.c.l.b16 %v1141
        %v1215 = vunpack.c.l.b16 %v1142
        %v1216 = vunpack.c.h.b16 %v1142
        %v1217 = vunpack.c.l.b16 %v1143
        %v1218 = vunpack.c.l.b16 %v1144
        %v1219 = vunpack.c.h.b16 %v1144
        %v1220 = vunpack.c.l.b16 %v1145
        %v1221 = vunpack.c.l.b16 %v1146
        %v1222 = vunpack.c.h.b16 %v1146
        %v1223 = vunpack.c.l.b16 %v1147
        %v1224 = vunpack.c.l.b16 %v1148
        %v1225 = vunpack.c.h.b16 %v1148
        %v1226 = vunpack.c.l.b16 %v1149
        %v1227 = vunpack.c.l.b16 %v1150
        %v1228 = vunpack.c.h.b16 %v1150
        %v1229 = vunpack.c.l.b16 %v1151
        %v1230 = vunpack.c.l.b16 %v1152
        %v1231 = vunpack.c.h.b16 %v1152
        %v1232 = vunpack.c.l.b16 %v1153
        %v1233 = vunpack.c.l.b16 %v1154
        %v1234 = vunpack.c.h.b16 %v1154
        %v1235 = vunpack.c.l.b16 %v1155
        %v1236 = vpack.c.b16 %v1191, %v1188
        %v1237 = vpack.c.b16 %v1192, %v1189
        %v1238 = vpack.c.b16 %v1193, %v1190
        %v1239 = vpack.c.b16 %v1197, %v1194
        %v1240 = vpack.c.b16 %v1198, %v1195
        %v1241 = vpack.c.b16 %v1199, %v1196
        %v1242 = vpack.c.b16 %v1203, %v1200
        %v1243 = vpack.c.b16 %v1204, %v1201
        %v1244 = vpack.c.b16 %v1205, %v1202
        %v1245 = vpack.c.b16 %v1209, %v1206
        %v1246 = vpack.c.b16 %v1210, %v1207
        %v1247 = vpack.c.b16 %v1211, %v1208
        %v1248 = vpack.c.b16 %v1215, %v1212
        %v1249 = vpack.c.b16 %v1216, %v1213
        %v1250 = vpack.c.b16 %v1217, %v1214
        %v1251 = vpack.c.b16 %v1221, %v1218
        %v1252 = vpack.c.b16 %v1222, %v1219
        %v1253 = vpack.c.b16 %v1223, %v1220
        %v1254 = vpack.c.b16 %v1227, %v1224
        %v1255 = vpack.c.b16 %v1228, %v1225
        %v1256 = vpack.c.b16 %v1229, %v1226
        %v1257 = vpack.c.b16 %v1233, %v1230
        %v1258 = vpack.c.b16 %v1234, %v1231
        %v1259 = vpack.c.b16 %v1235, %v1232
        %1284 = vmatpush.bf16.msra.mxu0 %v1257
        %1285 = vmatpush.bf16.msra.mxu0 %v1254
        %1286 = vmatpush.bf16.msra.mxu0 %v1251
        %1287 = vmatpush.bf16.msra.mxu0 %v1248
        %1288 = vmatpush.bf16.msra.mxu0 %v1245
        %1289 = vmatpush.bf16.msra.mxu0 %v1242
        %1290 = vmatpush.bf16.msra.mxu0 %v1239
        %1291 = vmatpush.bf16.msra.mxu0 %v1236
        %1292 = vmatmul.bf16.gmra.mxu0 %v1122
        %v1293 = vpop.f32.mrf.mxu0
        %v1294 = vadd.f32 0.0, %v1293
        %v1295 = vpop.f32.mrf.mxu0
        %1296 = vdwg.mxu0
        %1297 = vmatpush.bf16.msra.mxu0 %v1258
        %1298 = vmatpush.bf16.msra.mxu0 %v1255
        %1299 = vmatpush.bf16.msra.mxu0 %v1252
        %1300 = vmatpush.bf16.msra.mxu0 %v1249
        %1301 = vmatpush.bf16.msra.mxu0 %v1246
        %1302 = vmatpush.bf16.msra.mxu0 %v1243
        %1303 = vmatpush.bf16.msra.mxu0 %v1240
        %1304 = vmatpush.bf16.msra.mxu0 %v1237
        %1305 = vmatmul.bf16.gmra.mxu0 %v1122
        %v1306 = vpop.f32.mrf.mxu0
        %v1307 = vadd.f32 0.0, %v1306
        %v1308 = vpop.f32.mrf.mxu0
        %1309 = vdwg.mxu0
        %1310 = vmatpush.bf16.msra.mxu0 %v1259
        %1311 = vmatpush.bf16.msra.mxu0 %v1256
        %1312 = vmatpush.bf16.msra.mxu0 %v1253
        %1313 = vmatpush.bf16.msra.mxu0 %v1250
        %1314 = vmatpush.bf16.msra.mxu0 %v1247
        %1315 = vmatpush.bf16.msra.mxu0 %v1244
        %1316 = vmatpush.bf16.msra.mxu0 %v1241
        %1317 = vmatpush.bf16.msra.mxu0 %v1238
        %1318 = vmatmul.bf16.gmra.mxu0 %v1122
        %v1319 = vpop.f32.mrf.mxu0
        %v1320 = vadd.f32 0.0, %v1319
        %v1321 = vpop.f32.mrf.mxu0
        %1322 = vdwg.mxu0
        %v1323 = vadd.f32 %v1093, %v1294
        %v1324 = vadd.f32 %v1106, %v1307
        %s1325 = scalar_lea.vmem %s5, 2
        %v1326 = vld [vmem:[%s1325] sm:$0x3]
        %v1328 = vperm.slane %v1326, 0
        %v1329 = vperm.slane %v1326, 1
        %v1332 = vadd.f32 %v1323, %v1328
        %v1333 = vadd.f32 %v1324, %v1329
        %v1334 = vxor.u32 %v1332, 2147483648
        %v1335 = vxor.u32 %v1333, 2147483648
        %v1336 = vmul.f32 %v1334, 1.442695
        %v1337 = vpow.pop %v1336
        %v1338 = vmul.f32 %v1335, 1.442695
        %v1339 = vpow.pop %v1338
        %v1340 = vadd.f32 %v1337, 1.0
        %v1341 = vadd.f32 %v1339, 1.0
        %v1342 = vrcp.pop %v1340
        %v1343 = vmul.f32 %v1340, %v1342
        %v1344 = vsub.f32 1.0, %v1343
        %v1345 = vmul.f32 %v1342, %v1344
        %v1346 = vadd.f32 %v1342, %v1345
        %vm1347 = vweird.f32 %v1340
        %vm1348 = vweird.f32 %v1342
        %vm1349 = vmor %vm1347, %vm1348
        %v1350 = vsel %vm1349, %v1342, %v1346
        %v1351 = vand.u32 2147483647, %v1340
        %vm1352 = vcmp.eq.f32.partialorder %v1351, 8.507059e+37
        %v1353 = vand.u32 %v1340, 2147483648
        %v1354 = vor.u32 1.1754944e-38, %v1353
        %v1355 = vsel %vm1352, %v1354, %v1350
        %v1356 = vmul.f32 1.0, %v1355
        %v1357 = vrcp.pop %v1341
        %v1358 = vmul.f32 %v1341, %v1357
        %v1359 = vsub.f32 1.0, %v1358
        %v1360 = vmul.f32 %v1357, %v1359
        %v1361 = vadd.f32 %v1357, %v1360
        %vm1362 = vweird.f32 %v1341
        %vm1363 = vweird.f32 %v1357
        %vm1364 = vmor %vm1362, %vm1363
        %v1365 = vsel %vm1364, %v1357, %v1361
        %v1366 = vand.u32 2147483647, %v1341
        %vm1367 = vcmp.eq.f32.partialorder %v1366, 8.507059e+37
        %v1368 = vand.u32 %v1341, 2147483648
        %v1369 = vor.u32 1.1754944e-38, %v1368
        %v1370 = vsel %vm1367, %v1369, %v1365
        %v1371 = vmul.f32 1.0, %v1370
        %s1372 = scalar_lea.vmem %s6, 1
        %v1373 = vld [vmem:[%s1372] sm:$0x1]
        %v1375 = vperm.slane %v1373, 0
        %v1377 = vadd.f32 %v1119, %v1375
        %s1378 = scalar_lea.vmem %s7, 1
        %v1379 = vld [vmem:[%s1378] sm:$0x1]
        %v1381 = vperm.slane %v1379, 0
        %v1383 = vadd.f32 %v1320, %v1381
        %v1384 = vmul.f32 %v1356, %v1383
        %v1385 = vadd.f32 %v1377, %v1384
        %v1386 = vtanh.pop %v1385
        %v1387 = vsub.f32 1.0, %v1371
        %v1388 = vmul.f32 %v1387, %v1386
        %v1389 = vmul.f32 %v1371, %v920
        %v1390 = vadd.f32 %v1388, %v1389
        %1391 = vst [vmem:[%s919] sm:$0xff] %v1390
        %v1392 = vpack.c.bf16 %v1390, %v1390
        %v1393 = vld [vmem:[#allocation10] sm:$0xf]
        %v1394 = vld [vmem:[#allocation10 + $0x4] sm:$0xf]
        %v1395 = vld [vmem:[#allocation10 + $0x8] sm:$0xf]
        %v1396 = vld [vmem:[#allocation10 + $0xc] sm:$0xf]
        %v1397 = vld [vmem:[#allocation10 + $0x10] sm:$0xf]
        %v1398 = vld [vmem:[#allocation10 + $0x14] sm:$0xf]
        %v1399 = vld [vmem:[#allocation10 + $0x18] sm:$0xf]
        %v1400 = vld [vmem:[#allocation10 + $0x1c] sm:$0xf]
        %v1401 = vld [vmem:[#allocation10 + $0x20] sm:$0xf]
        %v1402 = vld [vmem:[#allocation10 + $0x24] sm:$0xf]
        %v1403 = vld [vmem:[#allocation10 + $0x28] sm:$0xf]
        %v1404 = vld [vmem:[#allocation10 + $0x2c] sm:$0xf]
        %v1405 = vld [vmem:[#allocation10 + $0x30] sm:$0xf]
        %v1406 = vld [vmem:[#allocation10 + $0x34] sm:$0xf]
        %v1407 = vld [vmem:[#allocation10 + $0x38] sm:$0xf]
        %v1408 = vld [vmem:[#allocation10 + $0x3c] sm:$0xf]
        %v1409 = vld [vmem:[%s9] sm:$0x1]
        %v1411 = vperm.slane %v1409, 0
        %v1429 = vunpack.c.l.b16 %v1393
        %v1430 = vunpack.c.l.b16 %v1394
        %v1431 = vunpack.c.l.b16 %v1395
        %v1432 = vunpack.c.l.b16 %v1396
        %v1433 = vunpack.c.l.b16 %v1397
        %v1434 = vunpack.c.l.b16 %v1398
        %v1435 = vunpack.c.l.b16 %v1399
        %v1436 = vunpack.c.l.b16 %v1400
        %v1437 = vunpack.c.l.b16 %v1401
        %v1438 = vunpack.c.l.b16 %v1402
        %v1439 = vunpack.c.l.b16 %v1403
        %v1440 = vunpack.c.l.b16 %v1404
        %v1441 = vunpack.c.l.b16 %v1405
        %v1442 = vunpack.c.l.b16 %v1406
        %v1443 = vunpack.c.l.b16 %v1407
        %v1444 = vunpack.c.l.b16 %v1408
        %v1445 = vpack.c.b16 %v1430, %v1429
        %v1446 = vpack.c.b16 %v1432, %v1431
        %v1447 = vpack.c.b16 %v1434, %v1433
        %v1448 = vpack.c.b16 %v1436, %v1435
        %v1449 = vpack.c.b16 %v1438, %v1437
        %v1450 = vpack.c.b16 %v1440, %v1439
        %v1451 = vpack.c.b16 %v1442, %v1441
        %v1452 = vpack.c.b16 %v1444, %v1443
        %1461 = vmatpush.bf16.msra.mxu0 %v1452
        %1462 = vmatpush.bf16.msra.mxu0 %v1451
        %1463 = vmatpush.bf16.msra.mxu0 %v1450
        %1464 = vmatpush.bf16.msra.mxu0 %v1449
        %1465 = vmatpush.bf16.msra.mxu0 %v1448
        %1466 = vmatpush.bf16.msra.mxu0 %v1447
        %1467 = vmatpush.bf16.msra.mxu0 %v1446
        %1468 = vmatpush.bf16.msra.mxu0 %v1445
        %1469 = vmatmul.bf16.gmra.mxu0 %v1392
        %v1470 = vpop.f32.mrf.mxu0
        %v1471 = vadd.f32 %v1411, %v1470
        %v1472 = vpop.f32.mrf.mxu0
        %1473 = vdwg.mxu0
        %1474 = vst [vmem:[%s394] sm:$0xff] %v1471
        %p1475 = scmp.eq.s32.totalorder %s33, 7
        // Predicated region
        $region73: #{_lambda_.1} parent=55 // pred_check
          %p1476 = pneg %p1475
        $region74: #{_lambda_.1} parent=55 // pred_check_branch
          %1478 = sbr.rel (%p1476) target = $region76
        $region75: #{_lambda_.1} parent=55 // pred_region
          %v1479 = vld [vmem:[#allocation2] sm:$0xff]
          %v1480 = vld [vmem:[#allocation2 + $0x8] sm:$0xff]
          %1481 = vst [vmem:[%s11] sm:$0xff] %v1479
          %1482 = vst [vmem:[%s11 + $0x8] sm:$0xff] %v1480
        $region76: #{_lambda_.1} parent=55 // pred_fallthru
          _
        %p1483 = scmp.lt.s32.totalorder %s33, 7
        %s1484 = scalar_select %p1483, %s33, 7
        %s1485 = smul.addr %s1484, 8
        %s1486 = scalar_lea.vmem %s10, %s1485
        // Predicated region
        $region77: #{_lambda_.1} parent=55 // pred_check
          %p1487 = pneg %p240
        $region78: #{_lambda_.1} parent=55 // pred_check_branch
          %1489 = sbr.rel (%p1487) target = $region80
        $region79: #{_lambda_.1} parent=55 // pred_region
          _
        $region80: #{_lambda_.1} parent=55 // pred_fallthru
          _
        // Predicated region
        $region81: #{_lambda_.1} parent=55 // pred_check
          %p1490 = pneg %p261
        $region82: #{_lambda_.1} parent=55 // pred_check_branch
          %1492 = sbr.rel (%p1490) target = $region84
        $region83: #{_lambda_.1} parent=55 // pred_region
          _
        $region84: #{_lambda_.1} parent=55 // pred_fallthru
          _
        // Predicated region
        $region85: #{_lambda_.1} parent=55 // pred_check
          %p1493 = pneg %p261
        $region86: #{_lambda_.1} parent=55 // pred_check_branch
          %1495 = sbr.rel (%p1493) target = $region88
        $region87: #{_lambda_.1} parent=55 // pred_region
          _
        $region88: #{_lambda_.1} parent=55 // pred_fallthru
          _
      $region56: #{_lambda_.1} parent=5 // pred_fallthru
        _
      %p1496 = scmp.le.s32.totalorder 2, %s28
      // Predicated region
      $region89: #{_lambda_.1} parent=5 // pred_check
        %p1497 = pneg %p1496
      $region90: #{_lambda_.1} parent=5 // pred_check_branch
        %1499 = sbr.rel (%p1497) target = $region92
      $region91: #{_lambda_.1} parent=5 // pred_region
        %s1500 = ssub.s32 %s28, 2
        // Predicated region
        $region93: #{_lambda_.1} parent=91 // pred_check
          %p1501 = pneg %p246
        $region94: #{_lambda_.1} parent=91 // pred_check_branch
          %1503 = sbr.rel (%p1501) target = $region96
        $region95: #{_lambda_.1} parent=91 // pred_region
          %p1504 = scmp.lt.s32.totalorder %s34, 7
          %s1505 = scalar_select %p1504, %s34, 7
          %s1506 = smul.addr %s1505, 8
          %s1507 = scalar_lea.vmem %s10, %s1506
        $region96: #{_lambda_.1} parent=91 // pred_fallthru
          _
      $region92: #{_lambda_.1} parent=5 // pred_fallthru
        _
    $region6: #{_lambda_.1} parent=1 // loop_footer
      %s32 = sadd.s32 1, %s28
    $region7: #{_lambda_.1} parent=1 // loop_footer_branch
      %27 = sbr.rel target = $region3
    $region8: #{_lambda_.1} parent=1 // loop_exit
      _
    %1508 = vsyncpa [#allocation7], 1
    %s1509 = scalar_lea.sflag [#allocation7], 1
    %1510 = vsyncpa %s1509, 1
    %1511 = vsyncpa [#allocation9], 1

</llo_original>
